<compile_context>
chip_gen: v7x
topology: tpu7x:2x2x1
jax: 0.10.0
libtpu: 0.0.40
codegen_flags: <defaults>
</compile_context>

<pallas_src>
import functools
import math

import jax
import jax.numpy as jnp
from jax import lax
from jax.experimental import pallas as pl
from jax.experimental.pallas import tpu as pltpu


def _round_up(x, m):
    return (x + m - 1) // m * m


def _pick_block(t_pad, target):
    """Largest multiple of 128 that divides t_pad and is <= max(target, 128)."""
    best = 128
    cand = 128
    hi = max(min(t_pad, target), 128)
    while cand <= hi:
        if t_pad % cand == 0:
            best = cand
        cand += 128
    return best


def _vmem_capacity_bytes():
    """Per-TensorCore VMEM capacity; falls back to the smallest generation (v7x, 64 MiB)."""
    try:
        info = pltpu.get_tpu_info()
        for name in ("vmem_capacity_bytes", "vmem_size_bytes", "vmem_bytes"):
            cap = getattr(info, name, None)
            if cap:
                return int(cap)
    except Exception:
        pass
    return 64 * 1024 * 1024


def _choose_block_b(B, ch, block_q, block_kv, nq, itemsize, budget):
    """Largest divisor of B whose per-step VMEM footprint fits the budget, preferring
    >= 2 (and even) parallel grid steps so v7x's two TensorCores both get work."""
    def footprint(bb):
        io = 2 * bb * ch * (2 * block_q + 2 * block_kv) * itemsize   # q/out + k/v, dbl-buffered
        scratch = bb * (ch + 2) * block_q * 4                        # acc + m + l (f32)
        inter = bb * block_kv * block_q * (2 * 4 + itemsize)         # s, p (f32) + p cast
        return io + scratch + inter

    divisors = [d for d in range(1, B + 1) if B % d == 0]
    ok = [d for d in divisors if footprint(d) <= budget] or [1]
    steps = lambda d: (B // d) * nq
    even = [d for d in ok if steps(d) >= 2 and steps(d) % 2 == 0]
    two = [d for d in ok if steps(d) >= 2]
    return max(even or two or ok)


def _attn_kernel(q_ref, k_ref, v_ref, o_ref, m_ref, l_ref, acc_ref, *,
                 scale2, seq_len, t_pad, block_kv, mxu_dtype):
    kv = pl.program_id(2)

    @pl.when(kv == 0)
    def _init():
        m_ref[...] = jnp.full_like(m_ref, -jnp.inf)
        l_ref[...] = jnp.zeros_like(l_ref)
        acc_ref[...] = jnp.zeros_like(acc_ref)

    q = q_ref[...]                                   # (bb, ch, block_q)
    k = k_ref[...]                                   # (bb, ch, block_kv)
    v = v_ref[...]                                   # (bb, ch, block_kv)
    if mxu_dtype is not None:
        q = q.astype(mxu_dtype)
        k = k.astype(mxu_dtype)
        v = v.astype(mxu_dtype)

    # Fold both 1/ch**0.25 scales into a single multiply on the *fresh* k tile
    # (the resident q block would be re-scaled on every kv step).
    k = k * jnp.asarray(scale2, dtype=k.dtype)

    # s[b, key, query] = sum_c k[b, c, key] * q[b, c, query]   (MXU, no transposes)
    s = lax.dot_general(k, q,
                        dimension_numbers=(((1,), (1,)), ((0,), (0,))),
                        preferred_element_type=jnp.float32)   # (bb, block_kv, block_q) f32

    if seq_len != t_pad:
        # Padding only ever lives in the last kv tile (t_pad - seq_len < 128 <= block_kv);
        # interior tiles produce an all-true predicate.  Iota carries no bb / t_pad factor.
        key_idx = kv * block_kv + lax.broadcasted_iota(
            jnp.int32, (1, s.shape[1], s.shape[2]), 1)
        s = jnp.where(key_idx < seq_len, s, -jnp.inf)

    # Online softmax over the key (sublane) axis, in f32.
    m_prev = m_ref[...]                                        # (bb, 1, block_q)
    m_new = jnp.maximum(m_prev, jnp.max(s, axis=1, keepdims=True))
    alpha = jnp.exp(m_prev - m_new)                            # (bb, 1, block_q)
    p = jnp.exp(s - m_new)                                     # (bb, block_kv, block_q) f32
    l_ref[...] = alpha * l_ref[...] + jnp.sum(p, axis=1, keepdims=True)

    # a[b, c, query] += sum_key v[b, c, key] * p[b, key, query]  (MXU, probs cast back to
    # the matmul dtype, matching the reference's weight.type(weight.dtype)).
    pv = lax.dot_general(v, p.astype(v.dtype),
                         dimension_numbers=(((2,), (1,)), ((0,), (0,))),
                         preferred_element_type=jnp.float32)   # (bb, ch, block_q)
    acc_ref[...] = alpha * acc_ref[...] + pv
    m_ref[...] = m_new

    @pl.when(kv == pl.num_programs(2) - 1)
    def _finalize():
        # Exact divide: executes once per output block, so the cost is negligible and we
        # avoid the ~1e-3 global error of the approximate reciprocal.
        o_ref[...] = (acc_ref[...] / l_ref[...]).astype(o_ref.dtype)


def qkv_attention_legacy(qkv, n_heads, *, block_q=None, block_kv=None, mxu_dtype=None):
    """qkv: [N, H*3*C, T] -> [N, H*C, T]  (matches QKVAttentionLegacy.forward)."""
    bs, width, length = qkv.shape
    assert width % (3 * n_heads) == 0
    ch = width // (3 * n_heads)
    scale2 = 1.0 / math.sqrt(ch)             # (1 / ch**0.25) ** 2, folded into k
    B = bs * n_heads
    itemsize = qkv.dtype.itemsize

    if mxu_dtype is not None:
        mxu_dtype = jnp.dtype(mxu_dtype)
        if mxu_dtype == qkv.dtype:
            mxu_dtype = None

    # Pad T only to a lane multiple (128); the kv-tail is handled by the in-kernel mask.
    t_pad = _round_up(length, 128)
    if block_kv is None:
        block_kv = _pick_block(t_pad, 512)
    if block_q is None:
        block_q = _pick_block(t_pad, 512)
    assert block_kv % 128 == 0 and t_pad % block_kv == 0
    assert block_q % 128 == 0 and t_pad % block_q == 0

    # Free reshape (contiguous) -> (B, 3, ch, T); no strided q/k/v slices in HBM.
    qkv_r = qkv.reshape(B, 3, ch, length)
    if t_pad != length:
        qkv_r = jnp.pad(qkv_r, ((0, 0), (0, 0), (0, 0), (0, t_pad - length)))

    # Generation-aware VMEM budgeting (128 MiB on v5e/v6e, 64 MiB per TC on v7x).
    vmem_cap = _vmem_capacity_bytes()
    vmem_limit = int(min(vmem_cap * 3 // 4, 100 * 1024 * 1024))
    budget = vmem_limit // 2

    nq = t_pad // block_q
    nkv = t_pad // block_kv
    bb = _choose_block_b(B, ch, block_q, block_kv, nq, itemsize, budget)
    grid = (B // bb, nq, nkv)                # batch & query parallel, kv reduction last

    q_spec = pl.BlockSpec((bb, pl.Squeezed(), ch, block_q), lambda b, i, j: (b, 0, 0, i))
    k_spec = pl.BlockSpec((bb, pl.Squeezed(), ch, block_kv), lambda b, i, j: (b, 1, 0, j))
    v_spec = pl.BlockSpec((bb, pl.Squeezed(), ch, block_kv), lambda b, i, j: (b, 2, 0, j))
    o_spec = pl.BlockSpec((bb, ch, block_q), lambda b, i, j: (b, 0, i))

    cost = pl.CostEstimate(
        flops=2 * 2 * B * ch * length * length,
        transcendentals=B * length * length,
        bytes_accessed=4 * B * ch * t_pad * itemsize)

    out_pad = pl.pallas_call(
        functools.partial(_attn_kernel, scale2=scale2, seq_len=length, t_pad=t_pad,
                          block_kv=block_kv, mxu_dtype=mxu_dtype),
        out_shape=jax.ShapeDtypeStruct((B, ch, t_pad), qkv.dtype),
        grid_spec=pltpu.PrefetchScalarGridSpec(
            num_scalar_prefetch=0,
            grid=grid,
            in_specs=[q_spec, k_spec, v_spec],
            out_specs=o_spec,
            scratch_shapes=[
                pltpu.VMEM((bb, 1, block_q), jnp.float32),    # running max  m
                pltpu.VMEM((bb, 1, block_q), jnp.float32),    # running sum  l
                pltpu.VMEM((bb, ch, block_q), jnp.float32),   # running numerator acc
            ]),
        compiler_params=pltpu.CompilerParams(
            dimension_semantics=("parallel", "parallel", "arbitrary"),
            vmem_limit_bytes=vmem_limit),
        cost_estimate=cost,
    )(qkv_r, qkv_r, qkv_r)

    out = out_pad[:, :, :length] if t_pad != length else out_pad
    return out.reshape(bs, n_heads * ch, length)


def _reference_qkv_attention(qkv, n_heads):
    """Pure-JAX reference mirroring the PyTorch module."""
    bs, width, length = qkv.shape
    ch = width // (3 * n_heads)
    scale = 1.0 / math.sqrt(math.sqrt(ch))
    qkv_flat = qkv.reshape(bs * n_heads, 3 * ch, length)
    q, k, v = qkv_flat[:, :ch], qkv_flat[:, ch:2 * ch], qkv_flat[:, 2 * ch:]
    w = jnp.einsum('bct,bcs->bts', q * scale, k * scale)
    w = jax.nn.softmax(w.astype(jnp.float32), axis=-1).astype(w.dtype)
    a = jnp.einsum('bts,bcs->bct', w, v)
    return a.reshape(bs, -1, length)


if __name__ == "__main__":
    attn = jax.jit(qkv_attention_legacy, static_argnums=(1,),
                   static_argnames=("block_q", "block_kv", "mxu_dtype"))
    tol = 2e-3

    # Test 1: N=2, H=2, C=8, T=16.  Single kv tile; T padded 16 -> 128 (masked keys).
    N, H, C, T = 2, 2, 8, 16
    qkv = jax.random.normal(jax.random.PRNGKey(0), (N, H * 3 * C, T), dtype=jnp.float32)
    out = jax.block_until_ready(attn(qkv, H))
    ref = _reference_qkv_attention(qkv, H)
    assert out.shape == (N, H * C, T), out.shape
    assert jnp.allclose(out, ref, atol=tol, rtol=tol), float(jnp.max(jnp.abs(out - ref)))

    # Test 2: multi-kv-tile online softmax + tail mask (T=200 padded to 256, kv tiles of 128).
    N2, H2, C2, T2 = 1, 2, 16, 200
    qkv2 = jax.random.normal(jax.random.PRNGKey(0), (N2, H2 * 3 * C2, T2),
                             dtype=jnp.float32)
    out2 = jax.block_until_ready(attn(qkv2, H2, block_kv=128))
    ref2 = _reference_qkv_attention(qkv2, H2)
    assert out2.shape == (N2, H2 * C2, T2), out2.shape
    assert jnp.allclose(out2, ref2, atol=tol, rtol=tol), float(jnp.max(jnp.abs(out2 - ref2)))

    # Test 3: bf16 MXU-operand fast path for f32 inputs (looser tolerance).
    out3 = jax.block_until_ready(attn(qkv2, H2, block_kv=128, mxu_dtype=jnp.bfloat16))
    assert out3.shape == (N2, H2 * C2, T2), out3.shape
    assert jnp.allclose(out3, ref2, atol=2e-2, rtol=2e-2), \
        float(jnp.max(jnp.abs(out3 - ref2)))

    print("KERNEL_OK")
</pallas_src>

<mosaic_0001>
module attributes {stable_mosaic.version = 11 : i64} {
  func.func @_attn_kernel(%arg0: i32, %arg1: i32, %arg2: i32, %arg3: memref<2x1x8x128xf32, #tpu.memory_space<vmem>>, %arg4: memref<2x1x8x128xf32, #tpu.memory_space<vmem>>, %arg5: memref<2x1x8x128xf32, #tpu.memory_space<vmem>>, %arg6: memref<2x8x128xf32, #tpu.memory_space<vmem>>, %arg7: memref<2x1x128xf32, #tpu.memory_space<vmem>>, %arg8: memref<2x1x128xf32, #tpu.memory_space<vmem>>, %arg9: memref<2x8x128xf32, #tpu.memory_space<vmem>>) attributes {dimension_semantics = [#tpu.dimension_semantics<parallel>, #tpu.dimension_semantics<parallel>, #tpu.dimension_semantics<arbitrary>], iteration_bounds = array<i64: 2, 1, 1>, scalar_prefetch = 0 : i64, scratch_operands = 3 : i64, tpu.core_type = #tpu.core_type<tc>, window_params = [{transform_indices = @transform_0, window_bounds = array<i64: 2, 1, 8, 128>}, {transform_indices = @transform_1, window_bounds = array<i64: 2, 1, 8, 128>}, {transform_indices = @transform_2, window_bounds = array<i64: 2, 1, 8, 128>}, {transform_indices = @transform_3, window_bounds = array<i64: 2, 8, 128>}]} {
    %c0_i32 = arith.constant 0 : i32
    %0 = arith.cmpi eq, %arg2, %c0_i32 : i32
    %1 = arith.extui %0 : i1 to i32
    %c0_i32_0 = arith.constant 0 : i32
    %2 = arith.cmpi ne, %1, %c0_i32_0 : i32
    scf.if %2 {
      %cst_37 = arith.constant 0xFF800000 : f32
      %47 = vector.broadcast %cst_37 : f32 to vector<2x1x128xf32>
      %c0_38 = arith.constant 0 : index
      %c0_39 = arith.constant 0 : index
      %c0_40 = arith.constant 0 : index
      %48 = vector.load %arg7[%c0_38, %c0_39, %c0_40] : memref<2x1x128xf32, #tpu.memory_space<vmem>>, vector<2x1x128xf32>
      tpu.vector_store %arg7[%c0_38, %c0_39, %c0_40], %47 {strides = array<i32>} : memref<2x1x128xf32, #tpu.memory_space<vmem>>, vector<2x1x128xf32>,
      %cst_41 = arith.constant 0.000000e+00 : f32
      %49 = vector.broadcast %cst_41 : f32 to vector<2x1x128xf32>
      %c0_42 = arith.constant 0 : index
      %c0_43 = arith.constant 0 : index
      %c0_44 = arith.constant 0 : index
      %50 = vector.load %arg8[%c0_42, %c0_43, %c0_44] : memref<2x1x128xf32, #tpu.memory_space<vmem>>, vector<2x1x128xf32>
      tpu.vector_store %arg8[%c0_42, %c0_43, %c0_44], %49 {strides = array<i32>} : memref<2x1x128xf32, #tpu.memory_space<vmem>>, vector<2x1x128xf32>,
      %cst_45 = arith.constant 0.000000e+00 : f32
      %51 = vector.broadcast %cst_45 : f32 to vector<2x8x128xf32>
      %c0_46 = arith.constant 0 : index
      %c0_47 = arith.constant 0 : index
      %c0_48 = arith.constant 0 : index
      %52 = vector.load %arg9[%c0_46, %c0_47, %c0_48] : memref<2x8x128xf32, #tpu.memory_space<vmem>>, vector<2x8x128xf32>
      tpu.vector_store %arg9[%c0_46, %c0_47, %c0_48], %51 {strides = array<i32>} : memref<2x8x128xf32, #tpu.memory_space<vmem>>, vector<2x8x128xf32>,
    } else {
    }
    %c0 = arith.constant 0 : index
    %c0_1 = arith.constant 0 : index
    %c0_2 = arith.constant 0 : index
    %c0_3 = arith.constant 0 : index
    %3 = vector.load %arg3[%c0, %c0_1, %c0_2, %c0_3] : memref<2x1x8x128xf32, #tpu.memory_space<vmem>>, vector<2x1x8x128xf32>
    %4 = vector.shape_cast %3 : vector<2x1x8x128xf32> to vector<2x8x128xf32>
    %c0_4 = arith.constant 0 : index
    %c0_5 = arith.constant 0 : index
    %c0_6 = arith.constant 0 : index
    %c0_7 = arith.constant 0 : index
    %5 = vector.load %arg4[%c0_4, %c0_5, %c0_6, %c0_7] : memref<2x1x8x128xf32, #tpu.memory_space<vmem>>, vector<2x1x8x128xf32>
    %6 = vector.shape_cast %5 : vector<2x1x8x128xf32> to vector<2x8x128xf32>
    %c0_8 = arith.constant 0 : index
    %c0_9 = arith.constant 0 : index
    %c0_10 = arith.constant 0 : index
    %c0_11 = arith.constant 0 : index
    %7 = vector.load %arg5[%c0_8, %c0_9, %c0_10, %c0_11] : memref<2x1x8x128xf32, #tpu.memory_space<vmem>>, vector<2x1x8x128xf32>
    %8 = vector.shape_cast %7 : vector<2x1x8x128xf32> to vector<2x8x128xf32>
    %cst = arith.constant 0.353553385 : f32
    %9 = vector.broadcast %cst : f32 to vector<2x8x128xf32>
    %10 = arith.mulf %6, %9 : vector<2x8x128xf32>
    %cst_12 = arith.constant dense<0.000000e+00> : vector<2x128x128xf32>
    %11 = tpu.matmul %10, %4, %cst_12 {dimension_numbers = #tpu.dot_dimension_numbers<[1], [1], [2], [2], [0, 0, 0, 2, 1, 2], [0], [0]>} : vector<2x8x128xf32>, vector<2x8x128xf32>, vector<2x128x128xf32> -> vector<2x128x128xf32>
    %c128_i32 = arith.constant 128 : i32
    %12 = arith.muli %arg2, %c128_i32 : i32
    %13 = tpu.iota {dimensions = array<i32: 1>} : vector<1x128x128xi32>
    %14 = vector.broadcast %12 : i32 to vector<1x128x128xi32>
    %15 = arith.addi %14, %13 : vector<1x128x128xi32>
    %c16_i32 = arith.constant 16 : i32
    %16 = vector.broadcast %c16_i32 : i32 to vector<1x128x128xi32>
    %17 = arith.cmpi slt, %15, %16 : vector<1x128x128xi32>
    %cst_13 = arith.constant 0xFF800000 : f32
    %18 = vector.shape_cast %17 : vector<1x128x128xi1> to vector<1x128x128xi1>
    %19 = vector.broadcast %18 : vector<1x128x128xi1> to vector<2x128x128xi1>
    %20 = vector.broadcast %cst_13 : f32 to vector<2x128x128xf32>
    %21 = arith.select %19, %11, %20 : vector<2x128x128xi1>, vector<2x128x128xf32>
    %c0_14 = arith.constant 0 : index
    %c0_15 = arith.constant 0 : index
    %c0_16 = arith.constant 0 : index
    %22 = vector.load %arg7[%c0_14, %c0_15, %c0_16] : memref<2x1x128xf32, #tpu.memory_space<vmem>>, vector<2x1x128xf32>
    %cst_17 = arith.constant dense<0xFF800000> : vector<2x128xf32>
    %23 = vector.multi_reduction <maximumf>, %21, %cst_17 [1] : vector<2x128x128xf32> to vector<2x128xf32>
    %24 = vector.shape_cast %23 : vector<2x128xf32> to vector<2x1x128xf32>
    %25 = arith.maximumf %22, %24 : vector<2x1x128xf32>
    %26 = arith.subf %22, %25 : vector<2x1x128xf32>
    %27 = math.exp %26 : vector<2x1x128xf32>
    %28 = vector.broadcast %25 : vector<2x1x128xf32> to vector<2x128x128xf32>
    %29 = arith.subf %21, %28 : vector<2x128x128xf32>
    %30 = math.exp %29 : vector<2x128x128xf32>
    %c0_18 = arith.constant 0 : index
    %c0_19 = arith.constant 0 : index
    %c0_20 = arith.constant 0 : index
    %31 = vector.load %arg8[%c0_18, %c0_19, %c0_20] : memref<2x1x128xf32, #tpu.memory_space<vmem>>, vector<2x1x128xf32>
    %32 = arith.mulf %27, %31 : vector<2x1x128xf32>
    %cst_21 = arith.constant dense<0.000000e+00> : vector<2x128xf32>
    %33 = vector.multi_reduction <add>, %30, %cst_21 [1] : vector<2x128x128xf32> to vector<2x128xf32>
    %34 = vector.shape_cast %33 : vector<2x128xf32> to vector<2x1x128xf32>
    %35 = arith.addf %32, %34 : vector<2x1x128xf32>
    %c0_22 = arith.constant 0 : index
    %c0_23 = arith.constant 0 : index
    %c0_24 = arith.constant 0 : index
    %36 = vector.load %arg8[%c0_22, %c0_23, %c0_24] : memref<2x1x128xf32, #tpu.memory_space<vmem>>, vector<2x1x128xf32>
    tpu.vector_store %arg8[%c0_22, %c0_23, %c0_24], %35 {strides = array<i32>} : memref<2x1x128xf32, #tpu.memory_space<vmem>>, vector<2x1x128xf32>,
    %cst_25 = arith.constant dense<0.000000e+00> : vector<2x8x128xf32>
    %37 = tpu.matmul %8, %30, %cst_25 {dimension_numbers = #tpu.dot_dimension_numbers<[2], [1], [1], [2], [0, 0, 0, 1, 1, 2], [0], [0]>} : vector<2x8x128xf32>, vector<2x128x128xf32>, vector<2x8x128xf32> -> vector<2x8x128xf32>
    %c0_26 = arith.constant 0 : index
    %c0_27 = arith.constant 0 : index
    %c0_28 = arith.constant 0 : index
    %38 = vector.load %arg9[%c0_26, %c0_27, %c0_28] : memref<2x8x128xf32, #tpu.memory_space<vmem>>, vector<2x8x128xf32>
    %39 = vector.broadcast %27 : vector<2x1x128xf32> to vector<2x8x128xf32>
    %40 = arith.mulf %39, %38 : vector<2x8x128xf32>
    %41 = arith.addf %40, %37 : vector<2x8x128xf32>
    %c0_29 = arith.constant 0 : index
    %c0_30 = arith.constant 0 : index
    %c0_31 = arith.constant 0 : index
    %42 = vector.load %arg9[%c0_29, %c0_30, %c0_31] : memref<2x8x128xf32, #tpu.memory_space<vmem>>, vector<2x8x128xf32>
    tpu.vector_store %arg9[%c0_29, %c0_30, %c0_31], %41 {strides = array<i32>} : memref<2x8x128xf32, #tpu.memory_space<vmem>>, vector<2x8x128xf32>,
    %c0_32 = arith.constant 0 : index
    %c0_33 = arith.constant 0 : index
    %c0_34 = arith.constant 0 : index
    %43 = vector.load %arg7[%c0_32, %c0_33, %c0_34] : memref<2x1x128xf32, #tpu.memory_space<vmem>>, vector<2x1x128xf32>
    tpu.vector_store %arg7[%c0_32, %c0_33, %c0_34], %25 {strides = array<i32>} : memref<2x1x128xf32, #tpu.memory_space<vmem>>, vector<2x1x128xf32>,
    %c0_i32_35 = arith.constant 0 : i32
    %44 = arith.cmpi eq, %arg2, %c0_i32_35 : i32
    %45 = arith.extui %44 : i1 to i32
    %c0_i32_36 = arith.constant 0 : i32
    %46 = arith.cmpi ne, %45, %c0_i32_36 : i32
    scf.if %46 {
      %c0_37 = arith.constant 0 : index
      %c0_38 = arith.constant 0 : index
      %c0_39 = arith.constant 0 : index
      %47 = vector.load %arg9[%c0_37, %c0_38, %c0_39] : memref<2x8x128xf32, #tpu.memory_space<vmem>>, vector<2x8x128xf32>
      %c0_40 = arith.constant 0 : index
      %c0_41 = arith.constant 0 : index
      %c0_42 = arith.constant 0 : index
      %48 = vector.load %arg8[%c0_40, %c0_41, %c0_42] : memref<2x1x128xf32, #tpu.memory_space<vmem>>, vector<2x1x128xf32>
      %49 = vector.broadcast %48 : vector<2x1x128xf32> to vector<2x8x128xf32>
      %50 = arith.divf %47, %49 : vector<2x8x128xf32>
      %c0_43 = arith.constant 0 : index
      %c0_44 = arith.constant 0 : index
      %c0_45 = arith.constant 0 : index
      %51 = vector.load %arg6[%c0_43, %c0_44, %c0_45] : memref<2x8x128xf32, #tpu.memory_space<vmem>>, vector<2x8x128xf32>
      tpu.vector_store %arg6[%c0_43, %c0_44, %c0_45], %50 {strides = array<i32>} : memref<2x8x128xf32, #tpu.memory_space<vmem>>, vector<2x8x128xf32>,
    } else {
    }
    return
  }
  func.func @transform_0(%arg0: i32, %arg1: i32, %arg2: i32) -> (i32, i32, i32, i32) {
    %c0_i32 = arith.constant 0 : i32
    %c0_i32_0 = arith.constant 0 : i32
    %c0_i32_1 = arith.constant 0 : i32
    return %arg0, %c0_i32, %c0_i32_0, %arg1 : i32, i32, i32, i32
  }
  func.func @transform_1(%arg0: i32, %arg1: i32, %arg2: i32) -> (i32, i32, i32, i32) {
    %c1_i32 = arith.constant 1 : i32
    %c0_i32 = arith.constant 0 : i32
    %c0_i32_0 = arith.constant 0 : i32
    return %arg0, %c1_i32, %c0_i32, %arg2 : i32, i32, i32, i32
  }
  func.func @transform_2(%arg0: i32, %arg1: i32, %arg2: i32) -> (i32, i32, i32, i32) {
    %c2_i32 = arith.constant 2 : i32
    %c0_i32 = arith.constant 0 : i32
    %c0_i32_0 = arith.constant 0 : i32
    return %arg0, %c2_i32, %c0_i32, %arg2 : i32, i32, i32, i32
  }
  func.func @transform_3(%arg0: i32, %arg1: i32, %arg2: i32) -> (i32, i32, i32) {
    %c0_i32 = arith.constant 0 : i32
    %c0_i32_0 = arith.constant 0 : i32
    return %arg0, %c0_i32, %arg1 : i32, i32, i32
  }
}

</mosaic_0001>

<llo_original>
// kernel: qkv_attention_legacy.1
$region0: #{qkv_attention_legacy.1}
  #allocation0 [shape = 'u32[]', space=smem, size = 0x4, offset = 0x4, fixed_abs, tag = 'smem constant byte address 0x4 - core index']
  #allocation1 [shape = 'u32[144,128]{1,0:T(1,128)}', space=vmem, size = 0x12000, scoped, tag = 'internal scratch']
  #allocation2 [shape = 'f32[2,1,128]{2,1,0:T(1,128)}', space=vmem, size = 0x400, scoped, tag = 'scratch operand']
  #allocation3 [shape = 'f32[2,1,128]{2,1,0:T(1,128)}', space=vmem, size = 0x400, scoped, tag = 'scratch operand']
  #allocation4 [shape = 'f32[2,8,128]{2,1,0:T(8,128)}', space=vmem, size = 0x2000, scoped, tag = 'scratch operand']
  %s0 = inlined_call_operand.vmem [shape: f32[4,3,8,128], index: 0, kind: input, shape index: {}, may-alias: {0,1,2}]
  %s1 = inlined_call_operand.vmem [shape: f32[4,3,8,128], index: 1, kind: input, shape index: {}, may-alias: {0,1,2}]
  %s2 = inlined_call_operand.vmem [shape: f32[4,3,8,128], index: 2, kind: input, shape index: {}, may-alias: {0,1,2}]
  %s3 = inlined_call_operand.hbm [shape: f32[4,8,128], index: 3, kind: output, shape index: {}]
  %s4 = sld [smem:[#allocation0]]
  $region167: #{qkv_attention_legacy.1} parent=0
    _
  %s6 = ssub.s32 1, %s4
  %s7 = scalar_select 0, %s6, %s4
  $region1: #{qkv_attention_legacy.1} parent=0
    #allocation5 [shape = 'u8[16384]{0}', space=vmem, size = 0x4000, scoped, tag = 'input window, operand 0']
    #allocation6 [shape = 'u8[16384]{0}', space=vmem, size = 0x4000, scoped, tag = 'input window, operand 1']
    #allocation7 [shape = 'u8[16384]{0}', space=vmem, size = 0x4000, scoped, tag = 'input window, operand 2']
    #allocation8 [shape = 'u8[16384]{0}', space=vmem, size = 0x4000, scoped, tag = 'output window, operand 0']
    #allocation9 [shape = 's32[2]{0}', space=sflag, size = 0x8, scoped, tag = 'scoped memory for qkv_attention_legacy.1']
    %8 = vsyncpa [#allocation9], 0
    %s9 = scalar_lea.sflag [#allocation9], 1
    %10 = vsyncpa %s9, 0
    loop: start=0, step=1, limit=4
    $region2: #{qkv_attention_legacy.1} parent=1 // loop_pre_header
      _
    $region3: #{qkv_attention_legacy.1} parent=1 // loop_header
      %s12 = sphi 0, %s16
      %p13 = scmp.ge.s32.totalorder %s12, 4
      %s19 = sphi 0, %s38
      %s20 = sphi 0, %s34
      %s21 = sphi 0, %s30
      %s22 = sphi 0, %s19
      %s23 = sphi 0, %s20
      %s24 = sphi 0, %s21
      %s25 = sphi 0, %s22
      %s26 = sphi 0, %s23
      %s27 = sphi 0, %s24
      %s43 = sphi 0, %s45
      %s46 = sphi 0, %s43
      %s47 = sphi 0, %s46
      %s63 = sphi 0, %s47
      %s71 = sphi 0, %s73
      %s74 = sphi 0, %s71
      %s75 = sphi 0, %s74
      %s91 = sphi 0, %s75
      %s99 = sphi 0, %s101
      %s102 = sphi 0, %s99
      %s103 = sphi 0, %s102
      %s119 = sphi 0, %s103
      %s127 = sphi 0, %s129
      %s130 = sphi 0, %s127
      %s131 = sphi 0, %s130
      %s147 = sphi 0, %s131
    $region4: #{qkv_attention_legacy.1} parent=1 // loop_header_branch
      %15 = sbr.rel (%p13) target = $region8
    $region5: #{qkv_attention_legacy.1} parent=1 // loop_body
      %s17 = ssub.s32 %s12, 1
      %s18 = ssub.s32 %s12, 2
      %s28 = sadd.s32 1, %s21
      %p29 = scmp.ge.s32.totalorder %s28, 1
      %s30 = scalar_select %p29, 0, %s28
      %s31 = sadd.s32 1, %s20
      %s32 = scalar_select %p29, %s31, %s20
      %p33 = scmp.ge.s32.totalorder %s32, 1
      %s34 = scalar_select %p33, 0, %s32
      %s35 = sadd.s32 1, %s19
      %s36 = scalar_select %p33, %s35, %s19
      %p37 = scmp.ge.s32.totalorder %s36, 2
      %s38 = scalar_select %p37, 0, %s36
      %s39 = ssub.s32 %s19, %s38
      %s40 = ssub.s32 %s20, %s34
      %s41 = sor.u32 %s39, %s40
      %p42 = scmp.eq.s32.totalorder %s41, 0
      %s44 = sadd.s32 %s43, 1
      %s45 = scalar_select %p42, %s43, %s44
      %p48 = pneg %p42
      %p49 = scmp.eq.s32.totalorder %s12, 1
      %p50 = por %p48, %p49
      %p51 = scmp.ne.s32.totalorder %s43, %s46
      %p52 = scmp.eq.s32.totalorder %s12, 0
      %p53 = por %p51, %p52
      %p54 = scmp.ne.s32.totalorder %s43, %s46
      %p55 = scmp.eq.s32.totalorder %s17, 1
      %p56 = por %p54, %p55
      %p57 = scmp.ne.s32.totalorder %s46, %s47
      %p58 = scmp.eq.s32.totalorder %s17, 0
      %p59 = por %p57, %p58
      %p60 = scmp.ne.s32.totalorder %s46, %s47
      %p61 = scmp.eq.s32.totalorder %s18, 1
      %p62 = por %p60, %p61
      %p64 = scmp.ne.s32.totalorder %s47, %s63
      %p65 = scmp.eq.s32.totalorder %s18, 0
      %p66 = por %p64, %p65
      %s67 = ssub.s32 %s19, %s38
      %s68 = ssub.s32 %s21, %s30
      %s69 = sor.u32 %s67, %s68
      %p70 = scmp.eq.s32.totalorder %s69, 0
      %s72 = sadd.s32 %s71, 1
      %s73 = scalar_select %p70, %s71, %s72
      %p76 = pneg %p70
      %p77 = scmp.eq.s32.totalorder %s12, 1
      %p78 = por %p76, %p77
      %p79 = scmp.ne.s32.totalorder %s71, %s74
      %p80 = scmp.eq.s32.totalorder %s12, 0
      %p81 = por %p79, %p80
      %p82 = scmp.ne.s32.totalorder %s71, %s74
      %p83 = scmp.eq.s32.totalorder %s17, 1
      %p84 = por %p82, %p83
      %p85 = scmp.ne.s32.totalorder %s74, %s75
      %p86 = scmp.eq.s32.totalorder %s17, 0
      %p87 = por %p85, %p86
      %p88 = scmp.ne.s32.totalorder %s74, %s75
      %p89 = scmp.eq.s32.totalorder %s18, 1
      %p90 = por %p88, %p89
      %p92 = scmp.ne.s32.totalorder %s75, %s91
      %p93 = scmp.eq.s32.totalorder %s18, 0
      %p94 = por %p92, %p93
      %s95 = ssub.s32 %s19, %s38
      %s96 = ssub.s32 %s21, %s30
      %s97 = sor.u32 %s95, %s96
      %p98 = scmp.eq.s32.totalorder %s97, 0
      %s100 = sadd.s32 %s99, 1
      %s101 = scalar_select %p98, %s99, %s100
      %p104 = pneg %p98
      %p105 = scmp.eq.s32.totalorder %s12, 1
      %p106 = por %p104, %p105
      %p107 = scmp.ne.s32.totalorder %s99, %s102
      %p108 = scmp.eq.s32.totalorder %s12, 0
      %p109 = por %p107, %p108
      %p110 = scmp.ne.s32.totalorder %s99, %s102
      %p111 = scmp.eq.s32.totalorder %s17, 1
      %p112 = por %p110, %p111
      %p113 = scmp.ne.s32.totalorder %s102, %s103
      %p114 = scmp.eq.s32.totalorder %s17, 0
      %p115 = por %p113, %p114
      %p116 = scmp.ne.s32.totalorder %s102, %s103
      %p117 = scmp.eq.s32.totalorder %s18, 1
      %p118 = por %p116, %p117
      %p120 = scmp.ne.s32.totalorder %s103, %s119
      %p121 = scmp.eq.s32.totalorder %s18, 0
      %p122 = por %p120, %p121
      %s123 = ssub.s32 %s19, %s38
      %s124 = ssub.s32 %s20, %s34
      %s125 = sor.u32 %s123, %s124
      %p126 = scmp.eq.s32.totalorder %s125, 0
      %s128 = sadd.s32 %s127, 1
      %s129 = scalar_select %p126, %s127, %s128
      %p132 = pneg %p126
      %p133 = scmp.eq.s32.totalorder %s12, 1
      %p134 = por %p132, %p133
      %p135 = scmp.ne.s32.totalorder %s127, %s130
      %p136 = scmp.eq.s32.totalorder %s12, 0
      %p137 = por %p135, %p136
      %p138 = scmp.ne.s32.totalorder %s127, %s130
      %p139 = scmp.eq.s32.totalorder %s17, 1
      %p140 = por %p138, %p139
      %p141 = scmp.ne.s32.totalorder %s130, %s131
      %p142 = scmp.eq.s32.totalorder %s17, 0
      %p143 = por %p141, %p142
      %p144 = scmp.ne.s32.totalorder %s130, %s131
      %p145 = scmp.eq.s32.totalorder %s18, 1
      %p146 = por %p144, %p145
      %p148 = scmp.ne.s32.totalorder %s131, %s147
      %p149 = scmp.eq.s32.totalorder %s18, 0
      %p150 = por %p148, %p149
      %p151 = scmp.le.s32.totalorder 1, %s12
      %p152 = scmp.lt.s32.totalorder %s12, 3
      %p153 = pnand %p151, %p152
      %p154 = pneg %p153
      // Predicated region
      $region9: #{qkv_attention_legacy.1} parent=5 // pred_check
        _
      $region10: #{qkv_attention_legacy.1} parent=5 // pred_check_branch
        %156 = sbr.rel (%p153) target = $region12
      $region11: #{qkv_attention_legacy.1} parent=5 // pred_region
        %s157 = ssub.s32 %s12, 1
      $region12: #{qkv_attention_legacy.1} parent=5 // pred_fallthru
        _
      %p158 = scmp.lt.s32.totalorder %s12, 2
      // Predicated region
      $region13: #{qkv_attention_legacy.1} parent=5 // pred_check
        %p159 = pneg %p158
      $region14: #{qkv_attention_legacy.1} parent=5 // pred_check_branch
        %161 = sbr.rel (%p159) target = $region16
      $region15: #{qkv_attention_legacy.1} parent=5 // pred_region
        // Predicated region
        $region17: #{qkv_attention_legacy.1} parent=15 // pred_check
          %p162 = pneg %p53
        $region18: #{qkv_attention_legacy.1} parent=15 // pred_check_branch
          %164 = sbr.rel (%p162) target = $region20
        $region19: #{qkv_attention_legacy.1} parent=15 // pred_region
          %s165 = sand.u32 %s43, 1
          %s166 = sand.u32 %s43, 1
          %s167 = smul.addr %s166, 16
          %s168 = scalar_lea.vmem [#allocation5], %s167
          %s169 = smul.u32 2, %s19
          %s170 = smul.addr %s169, 3
          %s171 = sadd.s32 %s20, %s170
          %s172 = smul.addr %s171, 8
          %s173 = scalar_lea.vmem %s0, %s172
          // Predicated region
          $region21: #{qkv_attention_legacy.1} parent=19 // pred_check
            _
          $region22: #{qkv_attention_legacy.1} parent=19 // pred_check_branch
            %175 = sbr.rel (0) target = $region24
          $region23: #{qkv_attention_legacy.1} parent=19 // pred_region
            // Predicated region
            $region25: #{qkv_attention_legacy.1} parent=23 // pred_check
              _
            $region26: #{qkv_attention_legacy.1} parent=23 // pred_check_branch
              %177 = sbr.rel (0) target = $region28
            $region27: #{qkv_attention_legacy.1} parent=23 // pred_region
              // Predicated region
              $region40: #{qkv_attention_legacy.1} parent=27 // pred_check
                _
              $region41: #{qkv_attention_legacy.1} parent=27 // pred_check_branch
                %194 = sbr.rel (0) target = $region43
              $region42: #{qkv_attention_legacy.1} parent=27 // pred_region
                loop: start=0, step=1, limit=1
                $region44: #{qkv_attention_legacy.1} parent=42 // loop_pre_header
                  _
                $region45: #{qkv_attention_legacy.1} parent=42 // loop_header
                  %s196 = sphi 0, %s200
                  %p197 = scmp.ge.s32.totalorder %s196, 1
                  %s201 = sphi %s173, %s173
                  %s202 = sphi %s168, %s168
                $region46: #{qkv_attention_legacy.1} parent=42 // loop_header_branch
                  %199 = sbr.rel (%p197) target = $region50
                $region47: #{qkv_attention_legacy.1} parent=42 // loop_body
                  %v203 = vld [vmem:[%s201] sm:$0xff]
                  %204 = vst [vmem:[%s202] sm:$0xff] %v203
                  %v205 = vld [vmem:[%s201 + $0x18] sm:$0xff]
                  %206 = vst [vmem:[%s202 + $0x8] sm:$0xff] %v205
                $region48: #{qkv_attention_legacy.1} parent=42 // loop_footer
                  %s200 = sadd.s32 1, %s196
                $region49: #{qkv_attention_legacy.1} parent=42 // loop_footer_branch
                  %195 = sbr.rel target = $region45
                $region50: #{qkv_attention_legacy.1} parent=42 // loop_exit
                  _
              $region43: #{qkv_attention_legacy.1} parent=27 // pred_fallthru
                _
              // Predicated region
              $region51: #{qkv_attention_legacy.1} parent=27 // pred_check
                _
              $region52: #{qkv_attention_legacy.1} parent=27 // pred_check_branch
                %208 = sbr.rel target = $region54
              $region53: #{qkv_attention_legacy.1} parent=27 // pred_region
                _
              $region54: #{qkv_attention_legacy.1} parent=27 // pred_fallthru
                _
            $region28: #{qkv_attention_legacy.1} parent=23 // pred_fallthru
              _
            // Predicated region
            $region29: #{qkv_attention_legacy.1} parent=23 // pred_check
              _
            $region30: #{qkv_attention_legacy.1} parent=23 // pred_check_branch
              %179 = sbr.rel target = $region32
            $region31: #{qkv_attention_legacy.1} parent=23 // pred_region
              loop: start=0, step=1, limit=1
              $region33: #{qkv_attention_legacy.1} parent=31 // loop_pre_header
                _
              $region34: #{qkv_attention_legacy.1} parent=31 // loop_header
                %s182 = sphi 0, %s186
                %p183 = scmp.ge.s32.totalorder %s182, 1
                %s187 = sphi %s173, %s173
                %s188 = sphi %s168, %s168
              $region35: #{qkv_attention_legacy.1} parent=31 // loop_header_branch
                %185 = sbr.rel (%p183) target = $region39
              $region36: #{qkv_attention_legacy.1} parent=31 // loop_body
                %v189 = vld [vmem:[%s187] sm:$0xff]
                %190 = vst [vmem:[%s188] sm:$0xff] %v189
                %v191 = vld [vmem:[%s187 + $0x18] sm:$0xff]
                %192 = vst [vmem:[%s188 + $0x8] sm:$0xff] %v191
              $region37: #{qkv_attention_legacy.1} parent=31 // loop_footer
                %s186 = sadd.s32 1, %s182
              $region38: #{qkv_attention_legacy.1} parent=31 // loop_footer_branch
                %181 = sbr.rel target = $region34
              $region39: #{qkv_attention_legacy.1} parent=31 // loop_exit
                _
            $region32: #{qkv_attention_legacy.1} parent=23 // pred_fallthru
              _
          $region24: #{qkv_attention_legacy.1} parent=19 // pred_fallthru
            _
          %209 = vnop
        $region20: #{qkv_attention_legacy.1} parent=15 // pred_fallthru
          _
        // Predicated region
        $region55: #{qkv_attention_legacy.1} parent=15 // pred_check
          %p210 = pneg %p81
        $region56: #{qkv_attention_legacy.1} parent=15 // pred_check_branch
          %212 = sbr.rel (%p210) target = $region58
        $region57: #{qkv_attention_legacy.1} parent=15 // pred_region
          %s213 = sand.u32 %s71, 1
          %s214 = sand.u32 %s71, 1
          %s215 = smul.addr %s214, 16
          %s216 = scalar_lea.vmem [#allocation6], %s215
          %s217 = smul.u32 2, %s19
          %s218 = sadd.s32 %s21, 1
          %s219 = smul.addr %s217, 3
          %s220 = sadd.s32 %s218, %s219
          %s221 = smul.addr %s220, 8
          %s222 = scalar_lea.vmem %s1, %s221
          // Predicated region
          $region59: #{qkv_attention_legacy.1} parent=57 // pred_check
            _
          $region60: #{qkv_attention_legacy.1} parent=57 // pred_check_branch
            %224 = sbr.rel (0) target = $region62
          $region61: #{qkv_attention_legacy.1} parent=57 // pred_region
            // Predicated region
            $region63: #{qkv_attention_legacy.1} parent=61 // pred_check
              _
            $region64: #{qkv_attention_legacy.1} parent=61 // pred_check_branch
              %226 = sbr.rel (0) target = $region66
            $region65: #{qkv_attention_legacy.1} parent=61 // pred_region
              // Predicated region
              $region78: #{qkv_attention_legacy.1} parent=65 // pred_check
                _
              $region79: #{qkv_attention_legacy.1} parent=65 // pred_check_branch
                %243 = sbr.rel (0) target = $region81
              $region80: #{qkv_attention_legacy.1} parent=65 // pred_region
                loop: start=0, step=1, limit=1
                $region82: #{qkv_attention_legacy.1} parent=80 // loop_pre_header
                  _
                $region83: #{qkv_attention_legacy.1} parent=80 // loop_header
                  %s245 = sphi 0, %s249
                  %p246 = scmp.ge.s32.totalorder %s245, 1
                  %s250 = sphi %s222, %s222
                  %s251 = sphi %s216, %s216
                $region84: #{qkv_attention_legacy.1} parent=80 // loop_header_branch
                  %248 = sbr.rel (%p246) target = $region88
                $region85: #{qkv_attention_legacy.1} parent=80 // loop_body
                  %v252 = vld [vmem:[%s250] sm:$0xff]
                  %253 = vst [vmem:[%s251] sm:$0xff] %v252
                  %v254 = vld [vmem:[%s250 + $0x18] sm:$0xff]
                  %255 = vst [vmem:[%s251 + $0x8] sm:$0xff] %v254
                $region86: #{qkv_attention_legacy.1} parent=80 // loop_footer
                  %s249 = sadd.s32 1, %s245
                $region87: #{qkv_attention_legacy.1} parent=80 // loop_footer_branch
                  %244 = sbr.rel target = $region83
                $region88: #{qkv_attention_legacy.1} parent=80 // loop_exit
                  _
              $region81: #{qkv_attention_legacy.1} parent=65 // pred_fallthru
                _
              // Predicated region
              $region89: #{qkv_attention_legacy.1} parent=65 // pred_check
                _
              $region90: #{qkv_attention_legacy.1} parent=65 // pred_check_branch
                %257 = sbr.rel target = $region92
              $region91: #{qkv_attention_legacy.1} parent=65 // pred_region
                _
              $region92: #{qkv_attention_legacy.1} parent=65 // pred_fallthru
                _
            $region66: #{qkv_attention_legacy.1} parent=61 // pred_fallthru
              _
            // Predicated region
            $region67: #{qkv_attention_legacy.1} parent=61 // pred_check
              _
            $region68: #{qkv_attention_legacy.1} parent=61 // pred_check_branch
              %228 = sbr.rel target = $region70
            $region69: #{qkv_attention_legacy.1} parent=61 // pred_region
              loop: start=0, step=1, limit=1
              $region71: #{qkv_attention_legacy.1} parent=69 // loop_pre_header
                _
              $region72: #{qkv_attention_legacy.1} parent=69 // loop_header
                %s231 = sphi 0, %s235
                %p232 = scmp.ge.s32.totalorder %s231, 1
                %s236 = sphi %s222, %s222
                %s237 = sphi %s216, %s216
              $region73: #{qkv_attention_legacy.1} parent=69 // loop_header_branch
                %234 = sbr.rel (%p232) target = $region77
              $region74: #{qkv_attention_legacy.1} parent=69 // loop_body
                %v238 = vld [vmem:[%s236] sm:$0xff]
                %239 = vst [vmem:[%s237] sm:$0xff] %v238
                %v240 = vld [vmem:[%s236 + $0x18] sm:$0xff]
                %241 = vst [vmem:[%s237 + $0x8] sm:$0xff] %v240
              $region75: #{qkv_attention_legacy.1} parent=69 // loop_footer
                %s235 = sadd.s32 1, %s231
              $region76: #{qkv_attention_legacy.1} parent=69 // loop_footer_branch
                %230 = sbr.rel target = $region72
              $region77: #{qkv_attention_legacy.1} parent=69 // loop_exit
                _
            $region70: #{qkv_attention_legacy.1} parent=61 // pred_fallthru
              _
          $region62: #{qkv_attention_legacy.1} parent=57 // pred_fallthru
            _
          %258 = vnop
        $region58: #{qkv_attention_legacy.1} parent=15 // pred_fallthru
          _
        // Predicated region
        $region93: #{qkv_attention_legacy.1} parent=15 // pred_check
          %p259 = pneg %p109
        $region94: #{qkv_attention_legacy.1} parent=15 // pred_check_branch
          %261 = sbr.rel (%p259) target = $region96
        $region95: #{qkv_attention_legacy.1} parent=15 // pred_region
          %s262 = sand.u32 %s99, 1
          %s263 = sand.u32 %s99, 1
          %s264 = smul.addr %s263, 16
          %s265 = scalar_lea.vmem [#allocation7], %s264
          %s266 = smul.u32 2, %s19
          %s267 = sadd.s32 %s21, 2
          %s268 = smul.addr %s266, 3
          %s269 = sadd.s32 %s267, %s268
          %s270 = smul.addr %s269, 8
          %s271 = scalar_lea.vmem %s2, %s270
          // Predicated region
          $region97: #{qkv_attention_legacy.1} parent=95 // pred_check
            _
          $region98: #{qkv_attention_legacy.1} parent=95 // pred_check_branch
            %273 = sbr.rel (0) target = $region100
          $region99: #{qkv_attention_legacy.1} parent=95 // pred_region
            // Predicated region
            $region101: #{qkv_attention_legacy.1} parent=99 // pred_check
              _
            $region102: #{qkv_attention_legacy.1} parent=99 // pred_check_branch
              %275 = sbr.rel (0) target = $region104
            $region103: #{qkv_attention_legacy.1} parent=99 // pred_region
              // Predicated region
              $region116: #{qkv_attention_legacy.1} parent=103 // pred_check
                _
              $region117: #{qkv_attention_legacy.1} parent=103 // pred_check_branch
                %292 = sbr.rel (0) target = $region119
              $region118: #{qkv_attention_legacy.1} parent=103 // pred_region
                loop: start=0, step=1, limit=1
                $region120: #{qkv_attention_legacy.1} parent=118 // loop_pre_header
                  _
                $region121: #{qkv_attention_legacy.1} parent=118 // loop_header
                  %s294 = sphi 0, %s298
                  %p295 = scmp.ge.s32.totalorder %s294, 1
                  %s299 = sphi %s271, %s271
                  %s300 = sphi %s265, %s265
                $region122: #{qkv_attention_legacy.1} parent=118 // loop_header_branch
                  %297 = sbr.rel (%p295) target = $region126
                $region123: #{qkv_attention_legacy.1} parent=118 // loop_body
                  %v301 = vld [vmem:[%s299] sm:$0xff]
                  %302 = vst [vmem:[%s300] sm:$0xff] %v301
                  %v303 = vld [vmem:[%s299 + $0x18] sm:$0xff]
                  %304 = vst [vmem:[%s300 + $0x8] sm:$0xff] %v303
                $region124: #{qkv_attention_legacy.1} parent=118 // loop_footer
                  %s298 = sadd.s32 1, %s294
                $region125: #{qkv_attention_legacy.1} parent=118 // loop_footer_branch
                  %293 = sbr.rel target = $region121
                $region126: #{qkv_attention_legacy.1} parent=118 // loop_exit
                  _
              $region119: #{qkv_attention_legacy.1} parent=103 // pred_fallthru
                _
              // Predicated region
              $region127: #{qkv_attention_legacy.1} parent=103 // pred_check
                _
              $region128: #{qkv_attention_legacy.1} parent=103 // pred_check_branch
                %306 = sbr.rel target = $region130
              $region129: #{qkv_attention_legacy.1} parent=103 // pred_region
                _
              $region130: #{qkv_attention_legacy.1} parent=103 // pred_fallthru
                _
            $region104: #{qkv_attention_legacy.1} parent=99 // pred_fallthru
              _
            // Predicated region
            $region105: #{qkv_attention_legacy.1} parent=99 // pred_check
              _
            $region106: #{qkv_attention_legacy.1} parent=99 // pred_check_branch
              %277 = sbr.rel target = $region108
            $region107: #{qkv_attention_legacy.1} parent=99 // pred_region
              loop: start=0, step=1, limit=1
              $region109: #{qkv_attention_legacy.1} parent=107 // loop_pre_header
                _
              $region110: #{qkv_attention_legacy.1} parent=107 // loop_header
                %s280 = sphi 0, %s284
                %p281 = scmp.ge.s32.totalorder %s280, 1
                %s285 = sphi %s271, %s271
                %s286 = sphi %s265, %s265
              $region111: #{qkv_attention_legacy.1} parent=107 // loop_header_branch
                %283 = sbr.rel (%p281) target = $region115
              $region112: #{qkv_attention_legacy.1} parent=107 // loop_body
                %v287 = vld [vmem:[%s285] sm:$0xff]
                %288 = vst [vmem:[%s286] sm:$0xff] %v287
                %v289 = vld [vmem:[%s285 + $0x18] sm:$0xff]
                %290 = vst [vmem:[%s286 + $0x8] sm:$0xff] %v289
              $region113: #{qkv_attention_legacy.1} parent=107 // loop_footer
                %s284 = sadd.s32 1, %s280
              $region114: #{qkv_attention_legacy.1} parent=107 // loop_footer_branch
                %279 = sbr.rel target = $region110
              $region115: #{qkv_attention_legacy.1} parent=107 // loop_exit
                _
            $region108: #{qkv_attention_legacy.1} parent=99 // pred_fallthru
              _
          $region100: #{qkv_attention_legacy.1} parent=95 // pred_fallthru
            _
          %307 = vnop
        $region96: #{qkv_attention_legacy.1} parent=15 // pred_fallthru
          _
      $region16: #{qkv_attention_legacy.1} parent=5 // pred_fallthru
        _
      %p308 = scmp.le.s32.totalorder 1, %s12
      %p309 = scmp.lt.s32.totalorder %s12, 3
      %p310 = pnand %p308, %p309
      %p311 = pneg %p310
      // Predicated region
      $region131: #{qkv_attention_legacy.1} parent=5 // pred_check
        _
      $region132: #{qkv_attention_legacy.1} parent=5 // pred_check_branch
        %313 = sbr.rel (%p310) target = $region134
      $region133: #{qkv_attention_legacy.1} parent=5 // pred_region
        %s314 = ssub.s32 %s12, 1
        %s315 = sand.u32 %s46, 1
        %s316 = sand.u32 %s46, 1
        %s317 = smul.addr %s316, 16
        %s318 = scalar_lea.vmem [#allocation5], %s317
        // Predicated region
        $region135: #{qkv_attention_legacy.1} parent=133 // pred_check
          %p319 = pneg %p59
        $region136: #{qkv_attention_legacy.1} parent=133 // pred_check_branch
          %321 = sbr.rel (%p319) target = $region138
        $region137: #{qkv_attention_legacy.1} parent=133 // pred_region
          _
        $region138: #{qkv_attention_legacy.1} parent=133 // pred_fallthru
          _
        %s322 = sand.u32 %s74, 1
        %s323 = sand.u32 %s74, 1
        %s324 = smul.addr %s323, 16
        %s325 = scalar_lea.vmem [#allocation6], %s324
        // Predicated region
        $region139: #{qkv_attention_legacy.1} parent=133 // pred_check
          %p326 = pneg %p87
        $region140: #{qkv_attention_legacy.1} parent=133 // pred_check_branch
          %328 = sbr.rel (%p326) target = $region142
        $region141: #{qkv_attention_legacy.1} parent=133 // pred_region
          _
        $region142: #{qkv_attention_legacy.1} parent=133 // pred_fallthru
          _
        %s329 = sand.u32 %s102, 1
        %s330 = sand.u32 %s102, 1
        %s331 = smul.addr %s330, 16
        %s332 = scalar_lea.vmem [#allocation7], %s331
        // Predicated region
        $region143: #{qkv_attention_legacy.1} parent=133 // pred_check
          %p333 = pneg %p115
        $region144: #{qkv_attention_legacy.1} parent=133 // pred_check_branch
          %335 = sbr.rel (%p333) target = $region146
        $region145: #{qkv_attention_legacy.1} parent=133 // pred_region
          _
        $region146: #{qkv_attention_legacy.1} parent=133 // pred_fallthru
          _
        %s336 = sand.u32 %s46, 1
        %s337 = sand.u32 %s46, 1
        %s338 = smul.addr %s337, 16
        %s339 = scalar_lea.vmem [#allocation5], %s338
        %p340 = pneg %p59
        %p341 = pneg %p56
        %s342 = sand.u32 %s74, 1
        %s343 = sand.u32 %s74, 1
        %s344 = smul.addr %s343, 16
        %s345 = scalar_lea.vmem [#allocation6], %s344
        %p346 = pneg %p87
        %p347 = pneg %p84
        %s348 = sand.u32 %s102, 1
        %s349 = sand.u32 %s102, 1
        %s350 = smul.addr %s349, 16
        %s351 = scalar_lea.vmem [#allocation7], %s350
        %p352 = pneg %p115
        %p353 = pneg %p112
        %p354 = pneg %p143
        %p355 = pneg %p140
        %s356 = sand.u32 %s130, 1
        %s357 = scalar_lea.sflag [#allocation9], %s356
        %s358 = sand.u32 %s130, 1
        %s359 = smul.addr %s358, 16
        %s360 = scalar_lea.vmem [#allocation8], %s359
        %s361 = smul.u32 2, %s22
        %s362 = smul.u32 2, %s22
        %s363 = smul.u32 2, %s22
        %s364 = smul.u32 2, %s22
        %p365 = scmp.eq.s32.totalorder %s24, 0
        // Predicated region
        $region147: #{qkv_attention_legacy.1} parent=133 // pred_check
          %p366 = pneg %p365
        $region148: #{qkv_attention_legacy.1} parent=133 // pred_check_branch
          %368 = sbr.rel (%p366) target = $region150
        $region149: #{qkv_attention_legacy.1} parent=133 // pred_region
          %369 = vst [vmem:[#allocation2] sm:$0x1] -inf
          %370 = vst [vmem:[#allocation2 + $0x1] sm:$0x1] -inf
          %371 = vst [vmem:[#allocation3] sm:$0x1] 0.0
          %372 = vst [vmem:[#allocation3 + $0x1] sm:$0x1] 0.0
          %373 = vst [vmem:[#allocation4] sm:$0xff] 0.0
          %374 = vst [vmem:[#allocation4 + $0x8] sm:$0xff] 0.0
        $region150: #{qkv_attention_legacy.1} parent=133 // pred_fallthru
          _
        %v375 = vld [vmem:[%s318] sm:$0xff]
        %v376 = vld [vmem:[%s318 + $0x8] sm:$0xff]
        %v377 = vld [vmem:[%s325] sm:$0xff]
        %v378 = vld [vmem:[%s325 + $0x8] sm:$0xff]
        %v379 = vld [vmem:[%s332] sm:$0xff]
        %v380 = vld [vmem:[%s332 + $0x8] sm:$0xff]
        %v381 = vmul.f32 %v377, 0.35355338
        %v382 = vmul.f32 %v378, 0.35355338
        %383 = vxpose.xlu0.b32.start [1/16] %v381, 128
        %384 = vxpose.xlu0.b32.cont [2/16] 0.0, 128
        %385 = vxpose.xlu0.b32.cont [3/16] 0.0, 128
        %386 = vxpose.xlu0.b32.cont [4/16] 0.0, 128
        %387 = vxpose.xlu0.b32.cont [5/16] 0.0, 128
        %388 = vxpose.xlu0.b32.cont [6/16] 0.0, 128
        %389 = vxpose.xlu0.b32.cont [7/16] 0.0, 128
        %390 = vxpose.xlu0.b32.cont [8/16] 0.0, 128
        %391 = vxpose.xlu0.b32.cont [9/16] 0.0, 128
        %392 = vxpose.xlu0.b32.cont [10/16] 0.0, 128
        %393 = vxpose.xlu0.b32.cont [11/16] 0.0, 128
        %394 = vxpose.xlu0.b32.cont [12/16] 0.0, 128
        %395 = vxpose.xlu0.b32.cont [13/16] 0.0, 128
        %396 = vxpose.xlu0.b32.cont [14/16] 0.0, 128
        %397 = vxpose.xlu0.b32.cont [15/16] 0.0, 128
        %398 = vxpose.xlu0.b32.end [16/16] 0.0, 128
        %v399 = vpop.trf.xlu0
        %v400 = vpop.trf.xlu0
        %v401 = vpop.trf.xlu0
        %v402 = vpop.trf.xlu0
        %v403 = vpop.trf.xlu0
        %v404 = vpop.trf.xlu0
        %v405 = vpop.trf.xlu0
        %v406 = vpop.trf.xlu0
        %v407 = vpop.trf.xlu0
        %v408 = vpop.trf.xlu0
        %v409 = vpop.trf.xlu0
        %v410 = vpop.trf.xlu0
        %v411 = vpop.trf.xlu0
        %v412 = vpop.trf.xlu0
        %v413 = vpop.trf.xlu0
        %v414 = vpop.trf.xlu0
        %vm415 = vcmask 64512
        %v417 = vsel %vm415, %v399, 0
        %v420 = vsel %vm415, %v400, 0
        %v423 = vsel %vm415, %v401, 0
        %v426 = vsel %vm415, %v402, 0
        %v429 = vsel %vm415, %v403, 0
        %v432 = vsel %vm415, %v404, 0
        %v435 = vsel %vm415, %v405, 0
        %v438 = vsel %vm415, %v406, 0
        %v441 = vsel %vm415, %v407, 0
        %v444 = vsel %vm415, %v408, 0
        %v447 = vsel %vm415, %v409, 0
        %v450 = vsel %vm415, %v410, 0
        %v453 = vsel %vm415, %v411, 0
        %v456 = vsel %vm415, %v412, 0
        %v459 = vsel %vm415, %v413, 0
        %v462 = vsel %vm415, %v414, 0
        %464 = vmatprep.subr.mxu0 0.0
        %465 = vmatpush1.msra.mxu0 %v375
        %466 = vmatprep.subr.mxu0 0.0
        %467 = vmatpush1.msra.mxu0 0.0
        %468 = vmatprep.subr.mxu0 0.0
        %469 = vmatpush1.msra.mxu0 0.0
        %470 = vmatprep.subr.mxu0 0.0
        %471 = vmatpush1.msra.mxu0 0.0
        %472 = vmatprep.subr.mxu0 0.0
        %473 = vmatpush1.msra.mxu0 0.0
        %474 = vmatprep.subr.mxu0 0.0
        %475 = vmatpush1.msra.mxu0 0.0
        %476 = vmatprep.subr.mxu0 0.0
        %477 = vmatpush1.msra.mxu0 0.0
        %478 = vmatprep.subr.mxu0 0.0
        %479 = vmatpush1.msra.mxu0 0.0
        %480 = vmatprep.subr.mxu0 0.0
        %481 = vmatpush1.msra.mxu0 0.0
        %482 = vmatprep.subr.mxu0 0.0
        %483 = vmatpush1.msra.mxu0 0.0
        %484 = vmatprep.subr.mxu0 0.0
        %485 = vmatpush1.msra.mxu0 0.0
        %486 = vmatprep.subr.mxu0 0.0
        %487 = vmatpush1.msra.mxu0 0.0
        %488 = vmatprep.subr.mxu0 0.0
        %489 = vmatpush1.msra.mxu0 0.0
        %490 = vmatprep.subr.mxu0 0.0
        %491 = vmatpush1.msra.mxu0 0.0
        %492 = vmatprep.subr.mxu0 0.0
        %493 = vmatpush1.msra.mxu0 0.0
        %494 = vmatprep.subr.mxu0 0.0
        %495 = vmatpush1.msra.mxu0 0.0
        %496 = vmatprep.subr.mxu0 0.0
        %497 = vmatpush1.msra.mxu0 0.0
        %498 = vmatprep.subr.mxu0 0.0
        %499 = vmatpush1.msra.mxu0 0.0
        %500 = vmatprep.subr.mxu0 0.0
        %501 = vmatpush1.msra.mxu0 0.0
        %502 = vmatprep.subr.mxu0 0.0
        %503 = vmatpush1.msra.mxu0 0.0
        %504 = vmatprep.subr.mxu0 0.0
        %505 = vmatpush1.msra.mxu0 0.0
        %506 = vmatprep.subr.mxu0 0.0
        %507 = vmatpush1.msra.mxu0 0.0
        %508 = vmatprep.subr.mxu0 0.0
        %509 = vmatpush1.msra.mxu0 0.0
        %510 = vmatprep.subr.mxu0 0.0
        %511 = vmatpush1.msra.mxu0 0.0
        %512 = vmatprep.subr.mxu0 0.0
        %513 = vmatpush1.msra.mxu0 0.0
        %514 = vmatprep.subr.mxu0 0.0
        %515 = vmatpush1.msra.mxu0 0.0
        %516 = vmatprep.subr.mxu0 0.0
        %517 = vmatpush1.msra.mxu0 0.0
        %518 = vmatprep.subr.mxu0 0.0
        %519 = vmatpush1.msra.mxu0 0.0
        %520 = vmatprep.subr.mxu0 0.0
        %521 = vmatpush1.msra.mxu0 0.0
        %522 = vmatprep.subr.mxu0 0.0
        %523 = vmatpush1.msra.mxu0 0.0
        %524 = vmatprep.subr.mxu0 0.0
        %525 = vmatpush1.msra.mxu0 0.0
        %526 = vmatprep.subr.mxu0 0.0
        %527 = vmatpush1.msra.mxu0 0.0
        %528 = vmatprep.mubr.f32.mxu0 0.0
        %529 = vmatmul.mubr.f32.gmra.mrb[0].mxu0 %v417
        %v530 = vpop.f32.mrb[0].mxu0
        %v531 = vadd.f32 0.0, %v530
        %v532 = vpop.f32.mrb[0].mxu0
        %533 = vmatprep.mubr.f32.mxu0 0.0
        %534 = vmatmul.mubr.f32.gmra.mrb[0].mxu0 %v420
        %v535 = vpop.f32.mrb[0].mxu0
        %v536 = vadd.f32 0.0, %v535
        %v537 = vpop.f32.mrb[0].mxu0
        %538 = vmatprep.mubr.f32.mxu0 0.0
        %539 = vmatmul.mubr.f32.gmra.mrb[0].mxu0 %v423
        %v540 = vpop.f32.mrb[0].mxu0
        %v541 = vadd.f32 0.0, %v540
        %v542 = vpop.f32.mrb[0].mxu0
        %543 = vmatprep.mubr.f32.mxu0 0.0
        %544 = vmatmul.mubr.f32.gmra.mrb[0].mxu0 %v426
        %v545 = vpop.f32.mrb[0].mxu0
        %v546 = vadd.f32 0.0, %v545
        %v547 = vpop.f32.mrb[0].mxu0
        %548 = vmatprep.mubr.f32.mxu0 0.0
        %549 = vmatmul.mubr.f32.gmra.mrb[0].mxu0 %v429
        %v550 = vpop.f32.mrb[0].mxu0
        %v551 = vadd.f32 0.0, %v550
        %v552 = vpop.f32.mrb[0].mxu0
        %553 = vmatprep.mubr.f32.mxu0 0.0
        %554 = vmatmul.mubr.f32.gmra.mrb[0].mxu0 %v432
        %v555 = vpop.f32.mrb[0].mxu0
        %v556 = vadd.f32 0.0, %v555
        %v557 = vpop.f32.mrb[0].mxu0
        %558 = vmatprep.mubr.f32.mxu0 0.0
        %559 = vmatmul.mubr.f32.gmra.mrb[0].mxu0 %v435
        %v560 = vpop.f32.mrb[0].mxu0
        %v561 = vadd.f32 0.0, %v560
        %v562 = vpop.f32.mrb[0].mxu0
        %563 = vmatprep.mubr.f32.mxu0 0.0
        %564 = vmatmul.mubr.f32.gmra.mrb[0].mxu0 %v438
        %v565 = vpop.f32.mrb[0].mxu0
        %v566 = vadd.f32 0.0, %v565
        %v567 = vpop.f32.mrb[0].mxu0
        %568 = vmatprep.mubr.f32.mxu0 0.0
        %569 = vmatmul.mubr.f32.gmra.mrb[0].mxu0 %v441
        %v570 = vpop.f32.mrb[0].mxu0
        %v571 = vadd.f32 0.0, %v570
        %v572 = vpop.f32.mrb[0].mxu0
        %573 = vmatprep.mubr.f32.mxu0 0.0
        %574 = vmatmul.mubr.f32.gmra.mrb[0].mxu0 %v444
        %v575 = vpop.f32.mrb[0].mxu0
        %v576 = vadd.f32 0.0, %v575
        %v577 = vpop.f32.mrb[0].mxu0
        %578 = vmatprep.mubr.f32.mxu0 0.0
        %579 = vmatmul.mubr.f32.gmra.mrb[0].mxu0 %v447
        %v580 = vpop.f32.mrb[0].mxu0
        %v581 = vadd.f32 0.0, %v580
        %v582 = vpop.f32.mrb[0].mxu0
        %583 = vmatprep.mubr.f32.mxu0 0.0
        %584 = vmatmul.mubr.f32.gmra.mrb[0].mxu0 %v450
        %v585 = vpop.f32.mrb[0].mxu0
        %v586 = vadd.f32 0.0, %v585
        %v587 = vpop.f32.mrb[0].mxu0
        %588 = vmatprep.mubr.f32.mxu0 0.0
        %589 = vmatmul.mubr.f32.gmra.mrb[0].mxu0 %v453
        %v590 = vpop.f32.mrb[0].mxu0
        %v591 = vadd.f32 0.0, %v590
        %v592 = vpop.f32.mrb[0].mxu0
        %593 = vmatprep.mubr.f32.mxu0 0.0
        %594 = vmatmul.mubr.f32.gmra.mrb[0].mxu0 %v456
        %v595 = vpop.f32.mrb[0].mxu0
        %v596 = vadd.f32 0.0, %v595
        %v597 = vpop.f32.mrb[0].mxu0
        %598 = vmatprep.mubr.f32.mxu0 0.0
        %599 = vmatmul.mubr.f32.gmra.mrb[0].mxu0 %v459
        %v600 = vpop.f32.mrb[0].mxu0
        %v601 = vadd.f32 0.0, %v600
        %v602 = vpop.f32.mrb[0].mxu0
        %603 = vmatprep.mubr.f32.mxu0 0.0
        %604 = vmatmul.mubr.f32.gmra.mrb[0].mxu0 %v462
        %v605 = vpop.f32.mrb[0].mxu0
        %v606 = vadd.f32 0.0, %v605
        %v607 = vpop.f32.mrb[0].mxu0
        %608 = vdwg.mxu0
        %609 = vxpose.xlu0.b32.start [1/16] %v382, 128
        %610 = vxpose.xlu0.b32.cont [2/16] 0.0, 128
        %611 = vxpose.xlu0.b32.cont [3/16] 0.0, 128
        %612 = vxpose.xlu0.b32.cont [4/16] 0.0, 128
        %613 = vxpose.xlu0.b32.cont [5/16] 0.0, 128
        %614 = vxpose.xlu0.b32.cont [6/16] 0.0, 128
        %615 = vxpose.xlu0.b32.cont [7/16] 0.0, 128
        %616 = vxpose.xlu0.b32.cont [8/16] 0.0, 128
        %617 = vxpose.xlu0.b32.cont [9/16] 0.0, 128
        %618 = vxpose.xlu0.b32.cont [10/16] 0.0, 128
        %619 = vxpose.xlu0.b32.cont [11/16] 0.0, 128
        %620 = vxpose.xlu0.b32.cont [12/16] 0.0, 128
        %621 = vxpose.xlu0.b32.cont [13/16] 0.0, 128
        %622 = vxpose.xlu0.b32.cont [14/16] 0.0, 128
        %623 = vxpose.xlu0.b32.cont [15/16] 0.0, 128
        %624 = vxpose.xlu0.b32.end [16/16] 0.0, 128
        %v625 = vpop.trf.xlu0
        %v626 = vpop.trf.xlu0
        %v627 = vpop.trf.xlu0
        %v628 = vpop.trf.xlu0
        %v629 = vpop.trf.xlu0
        %v630 = vpop.trf.xlu0
        %v631 = vpop.trf.xlu0
        %v632 = vpop.trf.xlu0
        %v633 = vpop.trf.xlu0
        %v634 = vpop.trf.xlu0
        %v635 = vpop.trf.xlu0
        %v636 = vpop.trf.xlu0
        %v637 = vpop.trf.xlu0
        %v638 = vpop.trf.xlu0
        %v639 = vpop.trf.xlu0
        %v640 = vpop.trf.xlu0
        %v642 = vsel %vm415, %v625, 0
        %v645 = vsel %vm415, %v626, 0
        %v648 = vsel %vm415, %v627, 0
        %v651 = vsel %vm415, %v628, 0
        %v654 = vsel %vm415, %v629, 0
        %v657 = vsel %vm415, %v630, 0
        %v660 = vsel %vm415, %v631, 0
        %v663 = vsel %vm415, %v632, 0
        %v666 = vsel %vm415, %v633, 0
        %v669 = vsel %vm415, %v634, 0
        %v672 = vsel %vm415, %v635, 0
        %v675 = vsel %vm415, %v636, 0
        %v678 = vsel %vm415, %v637, 0
        %v681 = vsel %vm415, %v638, 0
        %v684 = vsel %vm415, %v639, 0
        %v687 = vsel %vm415, %v640, 0
        %689 = vmatprep.subr.mxu0 0.0
        %690 = vmatpush1.msra.mxu0 %v376
        %691 = vmatprep.subr.mxu0 0.0
        %692 = vmatpush1.msra.mxu0 0.0
        %693 = vmatprep.subr.mxu0 0.0
        %694 = vmatpush1.msra.mxu0 0.0
        %695 = vmatprep.subr.mxu0 0.0
        %696 = vmatpush1.msra.mxu0 0.0
        %697 = vmatprep.subr.mxu0 0.0
        %698 = vmatpush1.msra.mxu0 0.0
        %699 = vmatprep.subr.mxu0 0.0
        %700 = vmatpush1.msra.mxu0 0.0
        %701 = vmatprep.subr.mxu0 0.0
        %702 = vmatpush1.msra.mxu0 0.0
        %703 = vmatprep.subr.mxu0 0.0
        %704 = vmatpush1.msra.mxu0 0.0
        %705 = vmatprep.subr.mxu0 0.0
        %706 = vmatpush1.msra.mxu0 0.0
        %707 = vmatprep.subr.mxu0 0.0
        %708 = vmatpush1.msra.mxu0 0.0
        %709 = vmatprep.subr.mxu0 0.0
        %710 = vmatpush1.msra.mxu0 0.0
        %711 = vmatprep.subr.mxu0 0.0
        %712 = vmatpush1.msra.mxu0 0.0
        %713 = vmatprep.subr.mxu0 0.0
        %714 = vmatpush1.msra.mxu0 0.0
        %715 = vmatprep.subr.mxu0 0.0
        %716 = vmatpush1.msra.mxu0 0.0
        %717 = vmatprep.subr.mxu0 0.0
        %718 = vmatpush1.msra.mxu0 0.0
        %719 = vmatprep.subr.mxu0 0.0
        %720 = vmatpush1.msra.mxu0 0.0
        %721 = vmatprep.subr.mxu0 0.0
        %722 = vmatpush1.msra.mxu0 0.0
        %723 = vmatprep.subr.mxu0 0.0
        %724 = vmatpush1.msra.mxu0 0.0
        %725 = vmatprep.subr.mxu0 0.0
        %726 = vmatpush1.msra.mxu0 0.0
        %727 = vmatprep.subr.mxu0 0.0
        %728 = vmatpush1.msra.mxu0 0.0
        %729 = vmatprep.subr.mxu0 0.0
        %730 = vmatpush1.msra.mxu0 0.0
        %731 = vmatprep.subr.mxu0 0.0
        %732 = vmatpush1.msra.mxu0 0.0
        %733 = vmatprep.subr.mxu0 0.0
        %734 = vmatpush1.msra.mxu0 0.0
        %735 = vmatprep.subr.mxu0 0.0
        %736 = vmatpush1.msra.mxu0 0.0
        %737 = vmatprep.subr.mxu0 0.0
        %738 = vmatpush1.msra.mxu0 0.0
        %739 = vmatprep.subr.mxu0 0.0
        %740 = vmatpush1.msra.mxu0 0.0
        %741 = vmatprep.subr.mxu0 0.0
        %742 = vmatpush1.msra.mxu0 0.0
        %743 = vmatprep.subr.mxu0 0.0
        %744 = vmatpush1.msra.mxu0 0.0
        %745 = vmatprep.subr.mxu0 0.0
        %746 = vmatpush1.msra.mxu0 0.0
        %747 = vmatprep.subr.mxu0 0.0
        %748 = vmatpush1.msra.mxu0 0.0
        %749 = vmatprep.subr.mxu0 0.0
        %750 = vmatpush1.msra.mxu0 0.0
        %751 = vmatprep.subr.mxu0 0.0
        %752 = vmatpush1.msra.mxu0 0.0
        %753 = vmatprep.mubr.f32.mxu0 0.0
        %754 = vmatmul.mubr.f32.gmra.mrb[0].mxu0 %v642
        %v755 = vpop.f32.mrb[0].mxu0
        %v756 = vadd.f32 0.0, %v755
        %v757 = vpop.f32.mrb[0].mxu0
        %758 = vmatprep.mubr.f32.mxu0 0.0
        %759 = vmatmul.mubr.f32.gmra.mrb[0].mxu0 %v645
        %v760 = vpop.f32.mrb[0].mxu0
        %v761 = vadd.f32 0.0, %v760
        %v762 = vpop.f32.mrb[0].mxu0
        %763 = vmatprep.mubr.f32.mxu0 0.0
        %764 = vmatmul.mubr.f32.gmra.mrb[0].mxu0 %v648
        %v765 = vpop.f32.mrb[0].mxu0
        %v766 = vadd.f32 0.0, %v765
        %v767 = vpop.f32.mrb[0].mxu0
        %768 = vmatprep.mubr.f32.mxu0 0.0
        %769 = vmatmul.mubr.f32.gmra.mrb[0].mxu0 %v651
        %v770 = vpop.f32.mrb[0].mxu0
        %v771 = vadd.f32 0.0, %v770
        %v772 = vpop.f32.mrb[0].mxu0
        %773 = vmatprep.mubr.f32.mxu0 0.0
        %774 = vmatmul.mubr.f32.gmra.mrb[0].mxu0 %v654
        %v775 = vpop.f32.mrb[0].mxu0
        %v776 = vadd.f32 0.0, %v775
        %v777 = vpop.f32.mrb[0].mxu0
        %778 = vmatprep.mubr.f32.mxu0 0.0
        %779 = vmatmul.mubr.f32.gmra.mrb[0].mxu0 %v657
        %v780 = vpop.f32.mrb[0].mxu0
        %v781 = vadd.f32 0.0, %v780
        %v782 = vpop.f32.mrb[0].mxu0
        %783 = vmatprep.mubr.f32.mxu0 0.0
        %784 = vmatmul.mubr.f32.gmra.mrb[0].mxu0 %v660
        %v785 = vpop.f32.mrb[0].mxu0
        %v786 = vadd.f32 0.0, %v785
        %v787 = vpop.f32.mrb[0].mxu0
        %788 = vmatprep.mubr.f32.mxu0 0.0
        %789 = vmatmul.mubr.f32.gmra.mrb[0].mxu0 %v663
        %v790 = vpop.f32.mrb[0].mxu0
        %v791 = vadd.f32 0.0, %v790
        %v792 = vpop.f32.mrb[0].mxu0
        %793 = vmatprep.mubr.f32.mxu0 0.0
        %794 = vmatmul.mubr.f32.gmra.mrb[0].mxu0 %v666
        %v795 = vpop.f32.mrb[0].mxu0
        %v796 = vadd.f32 0.0, %v795
        %v797 = vpop.f32.mrb[0].mxu0
        %798 = vmatprep.mubr.f32.mxu0 0.0
        %799 = vmatmul.mubr.f32.gmra.mrb[0].mxu0 %v669
        %v800 = vpop.f32.mrb[0].mxu0
        %v801 = vadd.f32 0.0, %v800
        %v802 = vpop.f32.mrb[0].mxu0
        %803 = vmatprep.mubr.f32.mxu0 0.0
        %804 = vmatmul.mubr.f32.gmra.mrb[0].mxu0 %v672
        %v805 = vpop.f32.mrb[0].mxu0
        %v806 = vadd.f32 0.0, %v805
        %v807 = vpop.f32.mrb[0].mxu0
        %808 = vmatprep.mubr.f32.mxu0 0.0
        %809 = vmatmul.mubr.f32.gmra.mrb[0].mxu0 %v675
        %v810 = vpop.f32.mrb[0].mxu0
        %v811 = vadd.f32 0.0, %v810
        %v812 = vpop.f32.mrb[0].mxu0
        %813 = vmatprep.mubr.f32.mxu0 0.0
        %814 = vmatmul.mubr.f32.gmra.mrb[0].mxu0 %v678
        %v815 = vpop.f32.mrb[0].mxu0
        %v816 = vadd.f32 0.0, %v815
        %v817 = vpop.f32.mrb[0].mxu0
        %818 = vmatprep.mubr.f32.mxu0 0.0
        %819 = vmatmul.mubr.f32.gmra.mrb[0].mxu0 %v681
        %v820 = vpop.f32.mrb[0].mxu0
        %v821 = vadd.f32 0.0, %v820
        %v822 = vpop.f32.mrb[0].mxu0
        %823 = vmatprep.mubr.f32.mxu0 0.0
        %824 = vmatmul.mubr.f32.gmra.mrb[0].mxu0 %v684
        %v825 = vpop.f32.mrb[0].mxu0
        %v826 = vadd.f32 0.0, %v825
        %v827 = vpop.f32.mrb[0].mxu0
        %828 = vmatprep.mubr.f32.mxu0 0.0
        %829 = vmatmul.mubr.f32.gmra.mrb[0].mxu0 %v687
        %v830 = vpop.f32.mrb[0].mxu0
        %v831 = vadd.f32 0.0, %v830
        %v832 = vpop.f32.mrb[0].mxu0
        %833 = vdwg.mxu0
        %s834 = smul.u32 %s24, 128
        %v835 = vlaneseq
        %v836 = vshrl.u32 %v835, 7
        %v837 = vadd.s32 %v836, 8
        %v838 = vadd.s32 %v836, 16
        %v839 = vadd.s32 %v836, 24
        %v840 = vadd.s32 %v836, 32
        %v841 = vadd.s32 %v836, 40
        %v842 = vadd.s32 %v836, 48
        %v843 = vadd.s32 %v836, 56
        %v844 = vadd.s32 %v836, 64
        %v845 = vadd.s32 %v836, 72
        %v846 = vadd.s32 %v836, 80
        %v847 = vadd.s32 %v836, 88
        %v848 = vadd.s32 %v836, 96
        %v849 = vadd.s32 %v836, 104
        %v850 = vadd.s32 %v836, 112
        %v851 = vadd.s32 %v836, 120
        %v852 = vstv %s834
        %v853 = vadd.s32 %v852, %v836
        %v854 = vadd.s32 %v852, %v837
        %v855 = vadd.s32 %v852, %v838
        %v856 = vadd.s32 %v852, %v839
        %v857 = vadd.s32 %v852, %v840
        %v858 = vadd.s32 %v852, %v841
        %v859 = vadd.s32 %v852, %v842
        %v860 = vadd.s32 %v852, %v843
        %v861 = vadd.s32 %v852, %v844
        %v862 = vadd.s32 %v852, %v845
        %v863 = vadd.s32 %v852, %v846
        %v864 = vadd.s32 %v852, %v847
        %v865 = vadd.s32 %v852, %v848
        %v866 = vadd.s32 %v852, %v849
        %v867 = vadd.s32 %v852, %v850
        %v868 = vadd.s32 %v852, %v851
        %vm869 = vcmp.lt.s32.totalorder %v853, 16
        %vm870 = vcmp.lt.s32.totalorder %v854, 16
        %vm871 = vcmp.lt.s32.totalorder %v855, 16
        %vm872 = vcmp.lt.s32.totalorder %v856, 16
        %vm873 = vcmp.lt.s32.totalorder %v857, 16
        %vm874 = vcmp.lt.s32.totalorder %v858, 16
        %vm875 = vcmp.lt.s32.totalorder %v859, 16
        %vm876 = vcmp.lt.s32.totalorder %v860, 16
        %vm877 = vcmp.lt.s32.totalorder %v861, 16
        %vm878 = vcmp.lt.s32.totalorder %v862, 16
        %vm879 = vcmp.lt.s32.totalorder %v863, 16
        %vm880 = vcmp.lt.s32.totalorder %v864, 16
        %vm881 = vcmp.lt.s32.totalorder %v865, 16
        %vm882 = vcmp.lt.s32.totalorder %v866, 16
        %vm883 = vcmp.lt.s32.totalorder %v867, 16
        %vm884 = vcmp.lt.s32.totalorder %v868, 16
        %v885 = vsel %vm869, 1, 0
        %v886 = vsel %vm870, 1, 0
        %v887 = vsel %vm871, 1, 0
        %v888 = vsel %vm872, 1, 0
        %v889 = vsel %vm873, 1, 0
        %v890 = vsel %vm874, 1, 0
        %v891 = vsel %vm875, 1, 0
        %v892 = vsel %vm876, 1, 0
        %v893 = vsel %vm877, 1, 0
        %v894 = vsel %vm878, 1, 0
        %v895 = vsel %vm879, 1, 0
        %v896 = vsel %vm880, 1, 0
        %v897 = vsel %vm881, 1, 0
        %v898 = vsel %vm882, 1, 0
        %v899 = vsel %vm883, 1, 0
        %v900 = vsel %vm884, 1, 0
        %vm901 = vcmp.eq.s32.totalorder %v885, 1
        %vm902 = vcmp.eq.s32.totalorder %v886, 1
        %vm903 = vcmp.eq.s32.totalorder %v887, 1
        %vm904 = vcmp.eq.s32.totalorder %v888, 1
        %vm905 = vcmp.eq.s32.totalorder %v889, 1
        %vm906 = vcmp.eq.s32.totalorder %v890, 1
        %vm907 = vcmp.eq.s32.totalorder %v891, 1
        %vm908 = vcmp.eq.s32.totalorder %v892, 1
        %vm909 = vcmp.eq.s32.totalorder %v893, 1
        %vm910 = vcmp.eq.s32.totalorder %v894, 1
        %vm911 = vcmp.eq.s32.totalorder %v895, 1
        %vm912 = vcmp.eq.s32.totalorder %v896, 1
        %vm913 = vcmp.eq.s32.totalorder %v897, 1
        %vm914 = vcmp.eq.s32.totalorder %v898, 1
        %vm915 = vcmp.eq.s32.totalorder %v899, 1
        %vm916 = vcmp.eq.s32.totalorder %v900, 1
        %v917 = vsel %vm901, %v531, -inf
        %v918 = vsel %vm902, %v536, -inf
        %v919 = vsel %vm903, %v541, -inf
        %v920 = vsel %vm904, %v546, -inf
        %v921 = vsel %vm905, %v551, -inf
        %v922 = vsel %vm906, %v556, -inf
        %v923 = vsel %vm907, %v561, -inf
        %v924 = vsel %vm908, %v566, -inf
        %v925 = vsel %vm909, %v571, -inf
        %v926 = vsel %vm910, %v576, -inf
        %v927 = vsel %vm911, %v581, -inf
        %v928 = vsel %vm912, %v586, -inf
        %v929 = vsel %vm913, %v591, -inf
        %v930 = vsel %vm914, %v596, -inf
        %v931 = vsel %vm915, %v601, -inf
        %v932 = vsel %vm916, %v606, -inf
        %v933 = vsel %vm901, %v756, -inf
        %v934 = vsel %vm902, %v761, -inf
        %v935 = vsel %vm903, %v766, -inf
        %v936 = vsel %vm904, %v771, -inf
        %v937 = vsel %vm905, %v776, -inf
        %v938 = vsel %vm906, %v781, -inf
        %v939 = vsel %vm907, %v786, -inf
        %v940 = vsel %vm908, %v791, -inf
        %v941 = vsel %vm909, %v796, -inf
        %v942 = vsel %vm910, %v801, -inf
        %v943 = vsel %vm911, %v806, -inf
        %v944 = vsel %vm912, %v811, -inf
        %v945 = vsel %vm913, %v816, -inf
        %v946 = vsel %vm914, %v821, -inf
        %v947 = vsel %vm915, %v826, -inf
        %v948 = vsel %vm916, %v831, -inf
        %v949 = vld [vmem:[#allocation2] sm:$0x1]
        %v950 = vld [vmem:[#allocation2 + $0x1] sm:$0x1]
        %v951 = vmax.f32 %v917, %v919
        %v952 = vmax.f32 %v918, %v920
        %v953 = vmax.f32 %v951, %v921
        %v954 = vmax.f32 %v952, %v922
        %v955 = vmax.f32 %v953, %v923
        %v956 = vmax.f32 %v954, %v924
        %v957 = vmax.f32 %v955, %v925
        %v958 = vmax.f32 %v956, %v926
        %v959 = vmax.f32 %v957, %v927
        %v960 = vmax.f32 %v958, %v928
        %v961 = vmax.f32 %v959, %v929
        %v962 = vmax.f32 %v960, %v930
        %v963 = vmax.f32 %v961, %v931
        %v964 = vmax.f32 %v962, %v932
        %v965 = vmax.f32 %v963, %v964
        %v966 = vrot.slane %v965, 4
        %v967 = vmax.f32 %v965, %v966
        %v968 = vrot.slane %v967, 2
        %v969 = vmax.f32 %v967, %v968
        %v970 = vrot.slane %v969, 1
        %v971 = vmax.f32 %v969, %v970
        %v972 = vmax.f32 %v933, %v935
        %v973 = vmax.f32 %v934, %v936
        %v974 = vmax.f32 %v972, %v937
        %v975 = vmax.f32 %v973, %v938
        %v976 = vmax.f32 %v974, %v939
        %v977 = vmax.f32 %v975, %v940
        %v978 = vmax.f32 %v976, %v941
        %v979 = vmax.f32 %v977, %v942
        %v980 = vmax.f32 %v978, %v943
        %v981 = vmax.f32 %v979, %v944
        %v982 = vmax.f32 %v980, %v945
        %v983 = vmax.f32 %v981, %v946
        %v984 = vmax.f32 %v982, %v947
        %v985 = vmax.f32 %v983, %v948
        %v986 = vmax.f32 %v984, %v985
        %v987 = vrot.slane %v986, 4
        %v988 = vmax.f32 %v986, %v987
        %v989 = vrot.slane %v988, 2
        %v990 = vmax.f32 %v988, %v989
        %v991 = vrot.slane %v990, 1
        %v992 = vmax.f32 %v990, %v991
        %v993 = vmax.f32 %v949, %v971
        %v994 = vmax.f32 %v950, %v992
        %v995 = vsub.f32 %v949, %v993
        %v996 = vsub.f32 %v950, %v994
        %v997 = vmul.f32 %v995, 1.442695
        %v998 = vpow.pop %v997
        %v999 = vmul.f32 %v996, 1.442695
        %v1000 = vpow.pop %v999
        %v1003 = vlaneseq
        %v1004 = vshrl.u32 %v1003, 7
        %v1005 = vsub.s32 0, %v1004
        %v1006 = vrot.slane %v993, %v1005
        %v1007 = vlaneseq
        %v1008 = vshrl.u32 %v1007, 7
        %v1009 = vsub.s32 0, %v1008
        %v1010 = vrot.slane %v994, %v1009
        %v1013 = vsub.f32 %v917, %v1006
        %v1014 = vsub.f32 %v918, %v1006
        %v1015 = vsub.f32 %v919, %v1006
        %v1016 = vsub.f32 %v920, %v1006
        %v1017 = vsub.f32 %v921, %v1006
        %v1018 = vsub.f32 %v922, %v1006
        %v1019 = vsub.f32 %v923, %v1006
        %v1020 = vsub.f32 %v924, %v1006
        %v1021 = vsub.f32 %v925, %v1006
        %v1022 = vsub.f32 %v926, %v1006
        %v1023 = vsub.f32 %v927, %v1006
        %v1024 = vsub.f32 %v928, %v1006
        %v1025 = vsub.f32 %v929, %v1006
        %v1026 = vsub.f32 %v930, %v1006
        %v1027 = vsub.f32 %v931, %v1006
        %v1028 = vsub.f32 %v932, %v1006
        %v1029 = vsub.f32 %v933, %v1010
        %v1030 = vsub.f32 %v934, %v1010
        %v1031 = vsub.f32 %v935, %v1010
        %v1032 = vsub.f32 %v936, %v1010
        %v1033 = vsub.f32 %v937, %v1010
        %v1034 = vsub.f32 %v938, %v1010
        %v1035 = vsub.f32 %v939, %v1010
        %v1036 = vsub.f32 %v940, %v1010
        %v1037 = vsub.f32 %v941, %v1010
        %v1038 = vsub.f32 %v942, %v1010
        %v1039 = vsub.f32 %v943, %v1010
        %v1040 = vsub.f32 %v944, %v1010
        %v1041 = vsub.f32 %v945, %v1010
        %v1042 = vsub.f32 %v946, %v1010
        %v1043 = vsub.f32 %v947, %v1010
        %v1044 = vsub.f32 %v948, %v1010
        %v1045 = vmul.f32 %v1013, 1.442695
        %v1046 = vpow.pop %v1045
        %v1047 = vmul.f32 %v1014, 1.442695
        %v1048 = vpow.pop %v1047
        %v1049 = vmul.f32 %v1015, 1.442695
        %v1050 = vpow.pop %v1049
        %v1051 = vmul.f32 %v1016, 1.442695
        %v1052 = vpow.pop %v1051
        %v1053 = vmul.f32 %v1017, 1.442695
        %v1054 = vpow.pop %v1053
        %v1055 = vmul.f32 %v1018, 1.442695
        %v1056 = vpow.pop %v1055
        %v1057 = vmul.f32 %v1019, 1.442695
        %v1058 = vpow.pop %v1057
        %v1059 = vmul.f32 %v1020, 1.442695
        %v1060 = vpow.pop %v1059
        %v1061 = vmul.f32 %v1021, 1.442695
        %v1062 = vpow.pop %v1061
        %v1063 = vmul.f32 %v1022, 1.442695
        %v1064 = vpow.pop %v1063
        %v1065 = vmul.f32 %v1023, 1.442695
        %v1066 = vpow.pop %v1065
        %v1067 = vmul.f32 %v1024, 1.442695
        %v1068 = vpow.pop %v1067
        %v1069 = vmul.f32 %v1025, 1.442695
        %v1070 = vpow.pop %v1069
        %v1071 = vmul.f32 %v1026, 1.442695
        %v1072 = vpow.pop %v1071
        %v1073 = vmul.f32 %v1027, 1.442695
        %v1074 = vpow.pop %v1073
        %v1075 = vmul.f32 %v1028, 1.442695
        %v1076 = vpow.pop %v1075
        %v1077 = vmul.f32 %v1029, 1.442695
        %v1078 = vpow.pop %v1077
        %v1079 = vmul.f32 %v1030, 1.442695
        %v1080 = vpow.pop %v1079
        %v1081 = vmul.f32 %v1031, 1.442695
        %v1082 = vpow.pop %v1081
        %v1083 = vmul.f32 %v1032, 1.442695
        %v1084 = vpow.pop %v1083
        %v1085 = vmul.f32 %v1033, 1.442695
        %v1086 = vpow.pop %v1085
        %v1087 = vmul.f32 %v1034, 1.442695
        %v1088 = vpow.pop %v1087
        %v1089 = vmul.f32 %v1035, 1.442695
        %v1090 = vpow.pop %v1089
        %v1091 = vmul.f32 %v1036, 1.442695
        %v1092 = vpow.pop %v1091
        %v1093 = vmul.f32 %v1037, 1.442695
        %v1094 = vpow.pop %v1093
        %v1095 = vmul.f32 %v1038, 1.442695
        %v1096 = vpow.pop %v1095
        %v1097 = vmul.f32 %v1039, 1.442695
        %v1098 = vpow.pop %v1097
        %v1099 = vmul.f32 %v1040, 1.442695
        %v1100 = vpow.pop %v1099
        %v1101 = vmul.f32 %v1041, 1.442695
        %v1102 = vpow.pop %v1101
        %v1103 = vmul.f32 %v1042, 1.442695
        %v1104 = vpow.pop %v1103
        %v1105 = vmul.f32 %v1043, 1.442695
        %v1106 = vpow.pop %v1105
        %v1107 = vmul.f32 %v1044, 1.442695
        %v1108 = vpow.pop %v1107
        %v1109 = vld [vmem:[#allocation3] sm:$0x1]
        %v1110 = vld [vmem:[#allocation3 + $0x1] sm:$0x1]
        %v1111 = vmul.f32 %v998, %v1109
        %v1112 = vmul.f32 %v1000, %v1110
        %v1113 = vadd.f32 %v1046, %v1048
        %v1114 = vadd.f32 %v1113, %v1050
        %v1115 = vadd.f32 %v1114, %v1052
        %v1116 = vadd.f32 %v1115, %v1054
        %v1117 = vadd.f32 %v1116, %v1056
        %v1118 = vadd.f32 %v1117, %v1058
        %v1119 = vadd.f32 %v1118, %v1060
        %v1120 = vadd.f32 %v1119, %v1062
        %v1121 = vadd.f32 %v1120, %v1064
        %v1122 = vadd.f32 %v1121, %v1066
        %v1123 = vadd.f32 %v1122, %v1068
        %v1124 = vadd.f32 %v1123, %v1070
        %v1125 = vadd.f32 %v1124, %v1072
        %v1126 = vadd.f32 %v1125, %v1074
        %v1127 = vadd.f32 %v1126, %v1076
        %v1128 = vrot.slane %v1127, 4
        %v1129 = vadd.f32 %v1127, %v1128
        %v1130 = vrot.slane %v1129, 2
        %v1131 = vadd.f32 %v1129, %v1130
        %v1132 = vrot.slane %v1131, 1
        %v1133 = vadd.f32 %v1131, %v1132
        %v1134 = vadd.f32 %v1078, %v1080
        %v1135 = vadd.f32 %v1134, %v1082
        %v1136 = vadd.f32 %v1135, %v1084
        %v1137 = vadd.f32 %v1136, %v1086
        %v1138 = vadd.f32 %v1137, %v1088
        %v1139 = vadd.f32 %v1138, %v1090
        %v1140 = vadd.f32 %v1139, %v1092
        %v1141 = vadd.f32 %v1140, %v1094
        %v1142 = vadd.f32 %v1141, %v1096
        %v1143 = vadd.f32 %v1142, %v1098
        %v1144 = vadd.f32 %v1143, %v1100
        %v1145 = vadd.f32 %v1144, %v1102
        %v1146 = vadd.f32 %v1145, %v1104
        %v1147 = vadd.f32 %v1146, %v1106
        %v1148 = vadd.f32 %v1147, %v1108
        %v1149 = vrot.slane %v1148, 4
        %v1150 = vadd.f32 %v1148, %v1149
        %v1151 = vrot.slane %v1150, 2
        %v1152 = vadd.f32 %v1150, %v1151
        %v1153 = vrot.slane %v1152, 1
        %v1154 = vadd.f32 %v1152, %v1153
        %v1155 = vadd.f32 %v1111, %v1133
        %v1156 = vadd.f32 %v1112, %v1154
        %1157 = vst [vmem:[#allocation3] sm:$0x1] %v1155
        %1158 = vst [vmem:[#allocation3 + $0x1] sm:$0x1] %v1156
        %1159 = vmatprep.subr.mxu0 0.0
        %1160 = vmatpush1.msra.mxu0 %v1046
        %1161 = vmatprep.subr.mxu0 0.0
        %1162 = vmatpush1.msra.mxu0 %v1048
        %1163 = vmatprep.subr.mxu0 0.0
        %1164 = vmatpush1.msra.mxu0 %v1050
        %1165 = vmatprep.subr.mxu0 0.0
        %1166 = vmatpush1.msra.mxu0 %v1052
        %1167 = vmatprep.subr.mxu0 0.0
        %1168 = vmatpush1.msra.mxu0 %v1054
        %1169 = vmatprep.subr.mxu0 0.0
        %1170 = vmatpush1.msra.mxu0 %v1056
        %1171 = vmatprep.subr.mxu0 0.0
        %1172 = vmatpush1.msra.mxu0 %v1058
        %1173 = vmatprep.subr.mxu0 0.0
        %1174 = vmatpush1.msra.mxu0 %v1060
        %1175 = vmatprep.subr.mxu0 0.0
        %1176 = vmatpush1.msra.mxu0 %v1062
        %1177 = vmatprep.subr.mxu0 0.0
        %1178 = vmatpush1.msra.mxu0 %v1064
        %1179 = vmatprep.subr.mxu0 0.0
        %1180 = vmatpush1.msra.mxu0 %v1066
        %1181 = vmatprep.subr.mxu0 0.0
        %1182 = vmatpush1.msra.mxu0 %v1068
        %1183 = vmatprep.subr.mxu0 0.0
        %1184 = vmatpush1.msra.mxu0 %v1070
        %1185 = vmatprep.subr.mxu0 0.0
        %1186 = vmatpush1.msra.mxu0 %v1072
        %1187 = vmatprep.subr.mxu0 0.0
        %1188 = vmatpush1.msra.mxu0 %v1074
        %1189 = vmatprep.subr.mxu0 0.0
        %1190 = vmatpush1.msra.mxu0 %v1076
        %1191 = vmatprep.subr.mxu0 0.0
        %1192 = vmatpush1.msra.mxu0 0.0
        %1193 = vmatprep.subr.mxu0 0.0
        %1194 = vmatpush1.msra.mxu0 0.0
        %1195 = vmatprep.subr.mxu0 0.0
        %1196 = vmatpush1.msra.mxu0 0.0
        %1197 = vmatprep.subr.mxu0 0.0
        %1198 = vmatpush1.msra.mxu0 0.0
        %1199 = vmatprep.subr.mxu0 0.0
        %1200 = vmatpush1.msra.mxu0 0.0
        %1201 = vmatprep.subr.mxu0 0.0
        %1202 = vmatpush1.msra.mxu0 0.0
        %1203 = vmatprep.subr.mxu0 0.0
        %1204 = vmatpush1.msra.mxu0 0.0
        %1205 = vmatprep.subr.mxu0 0.0
        %1206 = vmatpush1.msra.mxu0 0.0
        %1207 = vmatprep.subr.mxu0 0.0
        %1208 = vmatpush1.msra.mxu0 0.0
        %1209 = vmatprep.subr.mxu0 0.0
        %1210 = vmatpush1.msra.mxu0 0.0
        %1211 = vmatprep.subr.mxu0 0.0
        %1212 = vmatpush1.msra.mxu0 0.0
        %1213 = vmatprep.subr.mxu0 0.0
        %1214 = vmatpush1.msra.mxu0 0.0
        %1215 = vmatprep.subr.mxu0 0.0
        %1216 = vmatpush1.msra.mxu0 0.0
        %1217 = vmatprep.subr.mxu0 0.0
        %1218 = vmatpush1.msra.mxu0 0.0
        %1219 = vmatprep.subr.mxu0 0.0
        %1220 = vmatpush1.msra.mxu0 0.0
        %1221 = vmatprep.subr.mxu0 0.0
        %1222 = vmatpush1.msra.mxu0 0.0
        %1223 = vmatprep.mubr.f32.mxu0 0.0
        %1224 = vmatmul.mubr.f32.gmra.mrb[0].mxu0 %v379
        %v1225 = vpop.f32.mrb[0].mxu0
        %v1226 = vadd.f32 0.0, %v1225
        %v1227 = vpop.f32.mrb[0].mxu0
        %1228 = vdwg.mxu0
        %1229 = vmatprep.subr.mxu0 0.0
        %1230 = vmatpush1.msra.mxu0 %v1078
        %1231 = vmatprep.subr.mxu0 0.0
        %1232 = vmatpush1.msra.mxu0 %v1080
        %1233 = vmatprep.subr.mxu0 0.0
        %1234 = vmatpush1.msra.mxu0 %v1082
        %1235 = vmatprep.subr.mxu0 0.0
        %1236 = vmatpush1.msra.mxu0 %v1084
        %1237 = vmatprep.subr.mxu0 0.0
        %1238 = vmatpush1.msra.mxu0 %v1086
        %1239 = vmatprep.subr.mxu0 0.0
        %1240 = vmatpush1.msra.mxu0 %v1088
        %1241 = vmatprep.subr.mxu0 0.0
        %1242 = vmatpush1.msra.mxu0 %v1090
        %1243 = vmatprep.subr.mxu0 0.0
        %1244 = vmatpush1.msra.mxu0 %v1092
        %1245 = vmatprep.subr.mxu0 0.0
        %1246 = vmatpush1.msra.mxu0 %v1094
        %1247 = vmatprep.subr.mxu0 0.0
        %1248 = vmatpush1.msra.mxu0 %v1096
        %1249 = vmatprep.subr.mxu0 0.0
        %1250 = vmatpush1.msra.mxu0 %v1098
        %1251 = vmatprep.subr.mxu0 0.0
        %1252 = vmatpush1.msra.mxu0 %v1100
        %1253 = vmatprep.subr.mxu0 0.0
        %1254 = vmatpush1.msra.mxu0 %v1102
        %1255 = vmatprep.subr.mxu0 0.0
        %1256 = vmatpush1.msra.mxu0 %v1104
        %1257 = vmatprep.subr.mxu0 0.0
        %1258 = vmatpush1.msra.mxu0 %v1106
        %1259 = vmatprep.subr.mxu0 0.0
        %1260 = vmatpush1.msra.mxu0 %v1108
        %1261 = vmatprep.subr.mxu0 0.0
        %1262 = vmatpush1.msra.mxu0 0.0
        %1263 = vmatprep.subr.mxu0 0.0
        %1264 = vmatpush1.msra.mxu0 0.0
        %1265 = vmatprep.subr.mxu0 0.0
        %1266 = vmatpush1.msra.mxu0 0.0
        %1267 = vmatprep.subr.mxu0 0.0
        %1268 = vmatpush1.msra.mxu0 0.0
        %1269 = vmatprep.subr.mxu0 0.0
        %1270 = vmatpush1.msra.mxu0 0.0
        %1271 = vmatprep.subr.mxu0 0.0
        %1272 = vmatpush1.msra.mxu0 0.0
        %1273 = vmatprep.subr.mxu0 0.0
        %1274 = vmatpush1.msra.mxu0 0.0
        %1275 = vmatprep.subr.mxu0 0.0
        %1276 = vmatpush1.msra.mxu0 0.0
        %1277 = vmatprep.subr.mxu0 0.0
        %1278 = vmatpush1.msra.mxu0 0.0
        %1279 = vmatprep.subr.mxu0 0.0
        %1280 = vmatpush1.msra.mxu0 0.0
        %1281 = vmatprep.subr.mxu0 0.0
        %1282 = vmatpush1.msra.mxu0 0.0
        %1283 = vmatprep.subr.mxu0 0.0
        %1284 = vmatpush1.msra.mxu0 0.0
        %1285 = vmatprep.subr.mxu0 0.0
        %1286 = vmatpush1.msra.mxu0 0.0
        %1287 = vmatprep.subr.mxu0 0.0
        %1288 = vmatpush1.msra.mxu0 0.0
        %1289 = vmatprep.subr.mxu0 0.0
        %1290 = vmatpush1.msra.mxu0 0.0
        %1291 = vmatprep.subr.mxu0 0.0
        %1292 = vmatpush1.msra.mxu0 0.0
        %1293 = vmatprep.mubr.f32.mxu0 0.0
        %1294 = vmatmul.mubr.f32.gmra.mrb[0].mxu0 %v380
        %v1295 = vpop.f32.mrb[0].mxu0
        %v1296 = vadd.f32 0.0, %v1295
        %v1297 = vpop.f32.mrb[0].mxu0
        %1298 = vdwg.mxu0
        %v1299 = vld [vmem:[#allocation4] sm:$0xff]
        %v1300 = vld [vmem:[#allocation4 + $0x8] sm:$0xff]
        %v1303 = vlaneseq
        %v1304 = vshrl.u32 %v1303, 7
        %v1305 = vsub.s32 0, %v1304
        %v1306 = vrot.slane %v998, %v1305
        %v1307 = vlaneseq
        %v1308 = vshrl.u32 %v1307, 7
        %v1309 = vsub.s32 0, %v1308
        %v1310 = vrot.slane %v1000, %v1309
        %v1313 = vmul.f32 %v1306, %v1299
        %v1314 = vmul.f32 %v1310, %v1300
        %v1315 = vadd.f32 %v1313, %v1226
        %v1316 = vadd.f32 %v1314, %v1296
        %1317 = vst [vmem:[#allocation4] sm:$0xff] %v1315
        %1318 = vst [vmem:[#allocation4 + $0x8] sm:$0xff] %v1316
        %1319 = vst [vmem:[#allocation2] sm:$0x1] %v993
        %1320 = vst [vmem:[#allocation2 + $0x1] sm:$0x1] %v994
        // Predicated region
        $region151: #{qkv_attention_legacy.1} parent=133 // pred_check
          %p1321 = pneg %p365
        $region152: #{qkv_attention_legacy.1} parent=133 // pred_check_branch
          %1323 = sbr.rel (%p1321) target = $region154
        $region153: #{qkv_attention_legacy.1} parent=133 // pred_region
          %v1324 = vld [vmem:[#allocation4] sm:$0xff]
          %v1325 = vld [vmem:[#allocation4 + $0x8] sm:$0xff]
          %v1326 = vld [vmem:[#allocation3] sm:$0x1]
          %v1327 = vld [vmem:[#allocation3 + $0x1] sm:$0x1]
          %v1330 = vlaneseq
          %v1331 = vshrl.u32 %v1330, 7
          %v1332 = vsub.s32 0, %v1331
          %v1333 = vrot.slane %v1326, %v1332
          %v1334 = vlaneseq
          %v1335 = vshrl.u32 %v1334, 7
          %v1336 = vsub.s32 0, %v1335
          %v1337 = vrot.slane %v1327, %v1336
          %v1340 = vrcp.pop %v1333
          %v1341 = vmul.f32 %v1324, %v1340
          %v1342 = vrcp.pop %v1337
          %v1343 = vmul.f32 %v1325, %v1342
          %1344 = vst [vmem:[%s360] sm:$0xff] %v1341
          %1345 = vst [vmem:[%s360 + $0x8] sm:$0xff] %v1343
        $region154: #{qkv_attention_legacy.1} parent=133 // pred_fallthru
          _
        %s1346 = sand.u32 %s130, 1
        %s1347 = scalar_lea.sflag [#allocation9], %s1346
        %s1348 = sand.u32 %s130, 1
        %s1349 = smul.addr %s1348, 16
        %s1350 = scalar_lea.vmem [#allocation8], %s1349
        // Predicated region
        $region155: #{qkv_attention_legacy.1} parent=133 // pred_check
          %p1351 = pneg %p140
        $region156: #{qkv_attention_legacy.1} parent=133 // pred_check_branch
          %1353 = sbr.rel (%p1351) target = $region158
        $region157: #{qkv_attention_legacy.1} parent=133 // pred_region
          %s1354 = smul.u32 2, %s22
          %s1356 = ssub.s32 256, 256
          %1357 = vsyncadd %s1347, %s1356
          %s1358 = sadd.s32 %s23, %s1354
          %s1359 = smul.addr %s1358, 128
          %s1360 = scalar_lea.hbm %s3, %s1359
          %s1361 = sshll.u32 %s1350, 4
          %s1362 = int_to_ptr.vmem [resolvable:$true] %s1361
          %1367 = dma.vmem_to_hbm [thread:$0]  %s1362, 256, %s1360, %s1347, 128, 128, 8
        $region158: #{qkv_attention_legacy.1} parent=133 // pred_fallthru
          _
      $region134: #{qkv_attention_legacy.1} parent=5 // pred_fallthru
        _
      %p1368 = scmp.le.s32.totalorder 2, %s12
      // Predicated region
      $region159: #{qkv_attention_legacy.1} parent=5 // pred_check
        %p1369 = pneg %p1368
      $region160: #{qkv_attention_legacy.1} parent=5 // pred_check_branch
        %1371 = sbr.rel (%p1369) target = $region162
      $region161: #{qkv_attention_legacy.1} parent=5 // pred_region
        %s1372 = ssub.s32 %s12, 2
        // Predicated region
        $region163: #{qkv_attention_legacy.1} parent=161 // pred_check
          %p1373 = pneg %p146
        $region164: #{qkv_attention_legacy.1} parent=161 // pred_check_branch
          %1375 = sbr.rel (%p1373) target = $region166
        $region165: #{qkv_attention_legacy.1} parent=161 // pred_region
          %s1376 = sand.u32 %s131, 1
          %s1377 = scalar_lea.sflag [#allocation9], %s1376
          %s1378 = sand.u32 %s131, 1
          %s1379 = smul.addr %s1378, 16
          %s1380 = scalar_lea.vmem [#allocation8], %s1379
          %1381 = dma.done %s1377, 256
        $region166: #{qkv_attention_legacy.1} parent=161 // pred_fallthru
          _
      $region162: #{qkv_attention_legacy.1} parent=5 // pred_fallthru
        _
    $region6: #{qkv_attention_legacy.1} parent=1 // loop_footer
      %s16 = sadd.s32 1, %s12
    $region7: #{qkv_attention_legacy.1} parent=1 // loop_footer_branch
      %11 = sbr.rel target = $region3
    $region8: #{qkv_attention_legacy.1} parent=1 // loop_exit
      _
    %1382 = vsyncpa [#allocation9], 1
    %s1383 = scalar_lea.sflag [#allocation9], 1
    %1384 = vsyncpa %s1383, 1

</llo_original>
